<compile_context>
chip_gen: v7x
topology: tpu7x:2x2x1
jax: 0.10.0
libtpu: 0.0.40
codegen_flags: <defaults>
</compile_context>

<pallas_src>
import math
import jax
import jax.numpy as jnp
from jax.experimental import pallas as pl
from jax.experimental.pallas import tpu as pltpu

C = 8                                 # in_irreps multiplicity  ("8x0e")
S = 4                                 # sh_irreps multiplicity  ("4x0e")
O = 16                                # out_irreps multiplicity ("16x0e")
SO = S * O
W_NUMEL = C * S * O                   # tp.weight_numel = 512
TP_COEFF = 1.0 / math.sqrt(C * S)     # e3nn path normalization (single 0e x 0e -> 0e path)


def _round_up(x, m):
    return (x + m - 1) // m * m


def _softplus(x):
    # Numerically-stable softplus built only from max/exp/log/abs (Mosaic-safe).
    # Used identically in the kernel and the reference.
    return jnp.maximum(x, 0.0) + jnp.log(1.0 + jnp.exp(-jnp.abs(x)))


def _tp_conv_kernel(src_ref, xs_ref, ea_ref, w1_ref, b1_ref, w2_ref, b2_ref,
                    invc_ref, resid_ref, out_ref):
    """One (node-block, edge-tile) grid step, fully transposed (edges on lanes).

    fc1 / chunked fc2 on the MXU with lane-dense [*, TE] outputs, tensor
    product on the VPU as sublane-sliced FMAs, scatter-add as a lane-dense
    [O,TE]@[TE,NB] matmul into the VMEM-resident [O,NB] accumulator block.
    """
    n_blk = pl.program_id(0)
    e_blk = pl.program_id(1)
    te = ea_ref.shape[1]
    nb = out_ref.shape[1]
    mxu_dtype = w1_ref.dtype           # bf16 (default) or f32 (validation path)

    @pl.when(e_blk == 0)
    def _init():
        out_ref[...] = jnp.zeros_like(out_ref)

    # fc1: h_T = softplus(w1^T @ ea_T + b1)   -> [F, TE]  (lane-dense, f32 acc)
    h = jnp.dot(w1_ref[...], ea_ref[...],
                preferred_element_type=jnp.float32) + b1_ref[...]
    h = _softplus(h).astype(mxu_dtype)

    x_t = xs_ref[0:C, :]               # [C, TE]  node_attr[edge_dst]^T  (f32)
    sh_t = xs_ref[C:C + S, :]          # [S, TE]  edge_sh^T              (f32)

    # fc2 chunk-fused with the i-contraction: fc weights are produced in
    # [SO=64, TE] chunks and consumed immediately, so the [W_NUMEL, TE]
    # intermediate never exists.
    #   u[j*O+o, e] = sum_i x[i,e] * w[i*SO + j*O + o, e]
    #   tp[o, e]    = sum_j sh[j,e] * u[j*O + o, e]
    u = jnp.zeros((SO, te), jnp.float32)
    for i in range(C):
        w_i = jnp.dot(w2_ref[i * SO:(i + 1) * SO, :], h,
                      preferred_element_type=jnp.float32) \
            + b2_ref[i * SO:(i + 1) * SO, :]                  # [SO, TE]
        u = u + x_t[i:i + 1, :] * w_i
    tp = jnp.zeros((O, te), jnp.float32)
    for j in range(S):
        tp = tp + sh_t[j:j + 1, :] * u[j * O:(j + 1) * O, :]
    tp = TP_COEFF * tp                                        # [O, TE]

    # scatter-add over this node block: one-hot built in-kernel with nodes on
    # lanes; [O,TE]@[TE,NB] gives a lane-dense accumulator update.  Padded
    # edges carry src = -1 and never match any node column.
    node_ids = n_blk * nb + jax.lax.broadcasted_iota(jnp.int32, (te, nb), 1)
    oh = jnp.where(node_ids == src_ref[...], 1.0, 0.0).astype(mxu_dtype)  # [TE, NB]
    out_ref[...] += jnp.dot(tp.astype(mxu_dtype), oh,
                            preferred_element_type=jnp.float32)           # [O, NB]

    @pl.when(e_blk == pl.num_programs(1) - 1)
    def _finalize():
        # scatter-mean (inv_counts precomputed; empty nodes -> 0) + residual pad.
        out_ref[...] = out_ref[...] * invc_ref[...] + resid_ref[...]


def tensor_product_conv_layer(node_attr, edge_index, edge_attr, edge_sh, params,
                              out_nodes=None, residual=True, reduce="mean",
                              mxu_dtype=jnp.bfloat16, tile_e=1024, tile_n=512):
    N_out = node_attr.shape[0] if out_nodes is None else out_nodes
    E, F_edge = edge_attr.shape
    src, dst = edge_index[0], edge_index[1]
    w1, b1, w2, b2 = params

    TE = min(_round_up(tile_e, 128), _round_up(E, 128))       # edge tile (lanes)
    E_pad = _round_up(E, TE)
    NB = min(_round_up(tile_n, 128), _round_up(N_out, 128))   # node block (lanes)
    N_pad = _round_up(N_out, NB)
    pe = E_pad - E

    # --- wrapper glue: transpose to edges-on-lanes / nodes-on-lanes layouts ---
    xs = jnp.concatenate([node_attr[dst].astype(jnp.float32),
                          edge_sh.astype(jnp.float32)], axis=1)          # [E, C+S]
    xs_T = jnp.pad(xs, ((0, pe), (0, 0))).T                              # [C+S, E_pad]
    ea_T = jnp.pad(edge_attr, ((0, pe), (0, 0))).T.astype(mxu_dtype)     # [F, E_pad]
    src_col = jnp.pad(src.astype(jnp.int32), (0, pe),
                      constant_values=-1).reshape(E_pad, 1)              # pad edges never match

    if reduce == "mean":
        counts = jnp.zeros((N_out,), jnp.float32).at[src].add(1.0)
        inv_counts = jnp.where(counts > 0, 1.0 / counts, 0.0)            # empty node -> 0
    else:  # 'sum'
        inv_counts = jnp.ones((N_out,), jnp.float32)
    invc = jnp.pad(inv_counts, (0, N_pad - N_out)).reshape(1, N_pad)

    if residual:
        resid_T = jnp.pad(node_attr.astype(jnp.float32),
                          ((0, N_pad - node_attr.shape[0]),
                           (0, O - node_attr.shape[1]))).T               # [O, N_pad]
    else:
        resid_T = jnp.zeros((O, N_pad), jnp.float32)

    w1_T = w1.T.astype(mxu_dtype)                      # [F, F]
    b1_c = b1.reshape(-1, 1).astype(jnp.float32)       # [F, 1]
    w2_T = w2.T.astype(mxu_dtype)                      # [W_NUMEL, F]
    b2_c = b2.reshape(-1, 1).astype(jnp.float32)       # [W_NUMEL, 1]

    # VMEM budget (double-buffered per-tile inputs + residents + in-kernel temps).
    mxb = jnp.dtype(mxu_dtype).itemsize
    dma_in = 2 * TE * (4 + 4 * (C + S) + mxb * F_edge)
    resident = mxb * (F_edge * F_edge + W_NUMEL * F_edge) \
        + 4 * (F_edge + W_NUMEL) + 2 * 4 * NB * (1 + 2 * O)
    temps = TE * (2 * 4 * F_edge + 2 * 4 * SO + 4 * O) + TE * NB * (4 + mxb)
    vmem_limit = int(min(64 * 2 ** 20,
                         max(16 * 2 ** 20, 2 * (dma_in + resident + temps))))

    grid = (N_pad // NB, E_pad // TE)                  # (parallel nodes, reduced edges)
    in_specs = [
        pl.BlockSpec((TE, 1), lambda n, e: (e, 0)),            # edge_src column
        pl.BlockSpec((C + S, TE), lambda n, e: (0, e)),        # packed x_dst / edge_sh
        pl.BlockSpec((F_edge, TE), lambda n, e: (0, e)),       # edge_attr
        pl.BlockSpec((F_edge, F_edge), lambda n, e: (0, 0)),   # w1^T (resident)
        pl.BlockSpec((F_edge, 1), lambda n, e: (0, 0)),        # b1   (resident)
        pl.BlockSpec((W_NUMEL, F_edge), lambda n, e: (0, 0)),  # w2^T (resident)
        pl.BlockSpec((W_NUMEL, 1), lambda n, e: (0, 0)),       # b2   (resident)
        pl.BlockSpec((1, NB), lambda n, e: (0, n)),            # inv_counts (node block)
        pl.BlockSpec((O, NB), lambda n, e: (0, n)),            # residual   (node block)
    ]
    out_spec = pl.BlockSpec((O, NB), lambda n, e: (0, n))      # VMEM-resident accumulator

    out_T = pl.pallas_call(
        _tp_conv_kernel,
        out_shape=jax.ShapeDtypeStruct((O, N_pad), jnp.float32),
        grid=grid,
        in_specs=in_specs,
        out_specs=out_spec,
        compiler_params=pltpu.CompilerParams(
            dimension_semantics=("parallel", "arbitrary"),
            vmem_limit_bytes=vmem_limit),
    )(src_col, xs_T, ea_T, w1_T, b1_c, w2_T, b2_c, invc, resid_T)

    return out_T[:, :N_out].T


def _reference(node_attr, edge_index, edge_attr, edge_sh, params, mxu_dtype):
    """Pure-JAX reference. With mxu_dtype=f32 it is the exact f32 module math;
    with bf16 it mirrors the kernel's bf16-operand / f32-accumulate matmuls."""
    src, dst = edge_index[0], edge_index[1]
    w1, b1, w2, b2 = params
    E = edge_attr.shape[0]
    N = node_attr.shape[0]
    d = mxu_dtype
    h = _softplus(jnp.dot(edge_attr.astype(d), w1.astype(d),
                          preferred_element_type=jnp.float32) + b1)
    w = jnp.dot(h.astype(d), w2.astype(d),
                preferred_element_type=jnp.float32) + b2
    w = w.reshape(E, C, S, O)
    tp = TP_COEFF * jnp.einsum("ec,es,ecso->eo",
                               node_attr[dst].astype(jnp.float32),
                               edge_sh.astype(jnp.float32), w)
    tp = tp.astype(d).astype(jnp.float32)
    sums = jnp.zeros((N, O), jnp.float32).at[src].add(tp)
    counts = jnp.zeros((N, 1), jnp.float32).at[src].add(1.0)
    out = sums / jnp.maximum(counts, 1.0)
    return out + jnp.pad(node_attr.astype(jnp.float32),
                         ((0, 0), (0, O - node_attr.shape[1])))


def _make_inputs(key, n_nodes, n_edges, f_edge):
    kn, ke, ks, ki1, ki2, kw1, kb1, kw2, kb2 = jax.random.split(key, 9)
    node_attr = jax.random.normal(kn, (n_nodes, C), dtype=jnp.float32)
    edge_attr = jax.random.normal(ke, (n_edges, f_edge), dtype=jnp.float32)
    edge_sh = jax.random.normal(ks, (n_edges, S), dtype=jnp.float32)
    edge_src = jax.random.randint(ki1, (n_edges,), 0, n_nodes)
    edge_dst = jax.random.randint(ki2, (n_edges,), 0, n_nodes)
    edge_index = jnp.stack([edge_src, edge_dst])
    w1 = jax.random.normal(kw1, (f_edge, f_edge), dtype=jnp.float32) / math.sqrt(f_edge)
    b1 = 0.1 * jax.random.normal(kb1, (f_edge,), dtype=jnp.float32)
    w2 = jax.random.normal(kw2, (f_edge, W_NUMEL), dtype=jnp.float32) / math.sqrt(f_edge)
    b2 = 0.1 * jax.random.normal(kb2, (W_NUMEL,), dtype=jnp.float32)
    return node_attr, edge_index, edge_attr, edge_sh, (w1, b1, w2, b2)


def _check(node_attr, edge_index, edge_attr, edge_sh, params, tile_e, tile_n):
    # structural check: f32 MXU path must match the exact f32 reference tightly
    out_f32 = tensor_product_conv_layer(node_attr, edge_index, edge_attr, edge_sh,
                                        params, mxu_dtype=jnp.float32,
                                        tile_e=tile_e, tile_n=tile_n)
    out_f32 = jax.block_until_ready(out_f32)
    ref_f32 = _reference(node_attr, edge_index, edge_attr, edge_sh, params, jnp.float32)
    assert out_f32.shape == ref_f32.shape and out_f32.dtype == jnp.float32
    assert jnp.allclose(out_f32, ref_f32, atol=2e-3, rtol=2e-3), \
        float(jnp.max(jnp.abs(out_f32 - ref_f32)))

    # performance path: bf16 MXU operands, compared against a bf16-matched reference
    out_bf16 = tensor_product_conv_layer(node_attr, edge_index, edge_attr, edge_sh,
                                         params, mxu_dtype=jnp.bfloat16,
                                         tile_e=tile_e, tile_n=tile_n)
    out_bf16 = jax.block_until_ready(out_bf16)
    ref_bf16 = _reference(node_attr, edge_index, edge_attr, edge_sh, params, jnp.bfloat16)
    assert jnp.allclose(out_bf16, ref_bf16, atol=3e-2, rtol=3e-2), \
        float(jnp.max(jnp.abs(out_bf16 - ref_bf16)))


if __name__ == "__main__":
    key = jax.random.PRNGKey(0)
    k1, k2, k3 = jax.random.split(key, 3)

    # Test 1: small graph, single edge tile, single node block.
    na, ei, ea, es, prm = _make_inputs(k1, n_nodes=8, n_edges=16, f_edge=16)
    _check(na, ei, ea, es, prm, tile_e=512, tile_n=512)

    # Test 2: multi edge tile (init / accumulate / finalize + edge padding).
    na2, ei2, ea2, es2, prm2 = _make_inputs(k2, n_nodes=16, n_edges=300, f_edge=16)
    _check(na2, ei2, ea2, es2, prm2, tile_e=128, tile_n=512)

    # Test 3: multi node block x multi edge tile (parallel node-block axis).
    na3, ei3, ea3, es3, prm3 = _make_inputs(k3, n_nodes=300, n_edges=700, f_edge=16)
    _check(na3, ei3, ea3, es3, prm3, tile_e=256, tile_n=128)

    print("KERNEL_OK")
</pallas_src>

<mosaic_0001>
module attributes {stable_mosaic.version = 11 : i64} {
  func.func @_tp_conv_kernel(%arg0: i32, %arg1: i32, %arg2: memref<128x1xi32, #tpu.memory_space<vmem>>, %arg3: memref<12x128xf32, #tpu.memory_space<vmem>>, %arg4: memref<16x128xf32, #tpu.memory_space<vmem>>, %arg5: memref<16x16xf32, #tpu.memory_space<vmem>>, %arg6: memref<16x1xf32, #tpu.memory_space<vmem>>, %arg7: memref<512x16xf32, #tpu.memory_space<vmem>>, %arg8: memref<512x1xf32, #tpu.memory_space<vmem>>, %arg9: memref<1x128xf32, #tpu.memory_space<vmem>>, %arg10: memref<16x128xf32, #tpu.memory_space<vmem>>, %arg11: memref<16x128xf32, #tpu.memory_space<vmem>>) attributes {dimension_semantics = [#tpu.dimension_semantics<parallel>, #tpu.dimension_semantics<arbitrary>], iteration_bounds = array<i64: 1, 1>, scalar_prefetch = 0 : i64, scratch_operands = 0 : i64, tpu.core_type = #tpu.core_type<tc>, window_params = [{transform_indices = @transform_0, window_bounds = array<i64: 128, 1>}, {transform_indices = @transform_1, window_bounds = array<i64: 12, 128>}, {transform_indices = @transform_2, window_bounds = array<i64: 16, 128>}, {pipeline_mode = #tpu.pipeline_mode<synchronous>, transform_indices = @transform_3, window_bounds = array<i64: 16, 16>}, {pipeline_mode = #tpu.pipeline_mode<synchronous>, transform_indices = @transform_4, window_bounds = array<i64: 16, 1>}, {pipeline_mode = #tpu.pipeline_mode<synchronous>, transform_indices = @transform_5, window_bounds = array<i64: 512, 16>}, {pipeline_mode = #tpu.pipeline_mode<synchronous>, transform_indices = @transform_6, window_bounds = array<i64: 512, 1>}, {transform_indices = @transform_7, window_bounds = array<i64: 1, 128>}, {transform_indices = @transform_8, window_bounds = array<i64: 16, 128>}, {transform_indices = @transform_9, window_bounds = array<i64: 16, 128>}]} {
    %c0_i32 = arith.constant 0 : i32
    %0 = arith.cmpi eq, %arg1, %c0_i32 : i32
    %1 = arith.extui %0 : i1 to i32
    %c0_i32_0 = arith.constant 0 : i32
    %2 = arith.cmpi ne, %1, %c0_i32_0 : i32
    scf.if %2 {
      %cst_59 = arith.constant 0.000000e+00 : f32
      %134 = vector.broadcast %cst_59 : f32 to vector<16x128xf32>
      %c0_60 = arith.constant 0 : index
      %c0_61 = arith.constant 0 : index
      %135 = vector.load %arg11[%c0_60, %c0_61] : memref<16x128xf32, #tpu.memory_space<vmem>>, vector<16x128xf32>
      tpu.vector_store %arg11[%c0_60, %c0_61], %134 {strides = array<i32>} : memref<16x128xf32, #tpu.memory_space<vmem>>, vector<16x128xf32>,
    } else {
    }
    %c0 = arith.constant 0 : index
    %c0_1 = arith.constant 0 : index
    %3 = vector.load %arg5[%c0, %c0_1] : memref<16x16xf32, #tpu.memory_space<vmem>>, vector<16x16xf32>
    %c0_2 = arith.constant 0 : index
    %c0_3 = arith.constant 0 : index
    %4 = vector.load %arg4[%c0_2, %c0_3] : memref<16x128xf32, #tpu.memory_space<vmem>>, vector<16x128xf32>
    %cst = arith.constant dense<0.000000e+00> : vector<16x128xf32>
    %5 = tpu.matmul %3, %4, %cst {dimension_numbers = #tpu.dot_dimension_numbers<[1], [0], [0], [1], [0, 0, 1, 1], [], []>} : vector<16x16xf32>, vector<16x128xf32>, vector<16x128xf32> -> vector<16x128xf32>
    %c0_4 = arith.constant 0 : index
    %c0_5 = arith.constant 0 : index
    %6 = vector.load %arg6[%c0_4, %c0_5] : memref<16x1xf32, #tpu.memory_space<vmem>>, vector<16x1xf32>
    %7 = vector.broadcast %6 : vector<16x1xf32> to vector<16x128xf32>
    %8 = arith.addf %5, %7 : vector<16x128xf32>
    %cst_6 = arith.constant 0.000000e+00 : f32
    %9 = vector.broadcast %cst_6 : f32 to vector<16x128xf32>
    %10 = arith.maximumf %8, %9 : vector<16x128xf32>
    %11 = math.absf %8 : vector<16x128xf32>
    %cst_7 = arith.constant 0.000000e+00 : f32
    %12 = vector.broadcast %cst_7 : f32 to vector<16x128xf32>
    %13 = arith.subf %12, %11 : vector<16x128xf32>
    %14 = math.exp %13 : vector<16x128xf32>
    %cst_8 = arith.constant 1.000000e+00 : f32
    %15 = vector.broadcast %cst_8 : f32 to vector<16x128xf32>
    %16 = arith.addf %15, %14 : vector<16x128xf32>
    %17 = math.log %16 : vector<16x128xf32>
    %18 = arith.addf %10, %17 : vector<16x128xf32>
    %c0_9 = arith.constant 0 : index
    %c0_10 = arith.constant 0 : index
    %19 = vector.load %arg3[%c0_9, %c0_10] : memref<12x128xf32, #tpu.memory_space<vmem>>, vector<8x128xf32>
    %c8 = arith.constant 8 : index
    %c0_11 = arith.constant 0 : index
    %20 = vector.load %arg3[%c8, %c0_11] : memref<12x128xf32, #tpu.memory_space<vmem>>, vector<4x128xf32>
    %cst_12 = arith.constant 0.000000e+00 : f32
    %21 = vector.broadcast %cst_12 : f32 to vector<64x128xf32>
    %c0_13 = arith.constant 0 : index
    %c0_14 = arith.constant 0 : index
    %22 = vector.load %arg7[%c0_13, %c0_14] : memref<512x16xf32, #tpu.memory_space<vmem>>, vector<64x16xf32>
    %cst_15 = arith.constant dense<0.000000e+00> : vector<64x128xf32>
    %23 = tpu.matmul %22, %18, %cst_15 {dimension_numbers = #tpu.dot_dimension_numbers<[1], [0], [0], [1], [0, 0, 1, 1], [], []>} : vector<64x16xf32>, vector<16x128xf32>, vector<64x128xf32> -> vector<64x128xf32>
    %c0_16 = arith.constant 0 : index
    %c0_17 = arith.constant 0 : index
    %24 = vector.load %arg8[%c0_16, %c0_17] : memref<512x1xf32, #tpu.memory_space<vmem>>, vector<64x1xf32>
    %25 = vector.broadcast %24 : vector<64x1xf32> to vector<64x128xf32>
    %26 = arith.addf %23, %25 : vector<64x128xf32>
    %27 = vector.extract_strided_slice %19 {offsets = [0, 0], sizes = [1, 128], strides = [1, 1]} : vector<8x128xf32> to vector<1x128xf32>
    %28 = vector.broadcast %27 : vector<1x128xf32> to vector<64x128xf32>
    %29 = arith.mulf %28, %26 : vector<64x128xf32>
    %30 = arith.addf %21, %29 : vector<64x128xf32>
    %c64 = arith.constant 64 : index
    %c0_18 = arith.constant 0 : index
    %31 = vector.load %arg7[%c64, %c0_18] : memref<512x16xf32, #tpu.memory_space<vmem>>, vector<64x16xf32>
    %cst_19 = arith.constant dense<0.000000e+00> : vector<64x128xf32>
    %32 = tpu.matmul %31, %18, %cst_19 {dimension_numbers = #tpu.dot_dimension_numbers<[1], [0], [0], [1], [0, 0, 1, 1], [], []>} : vector<64x16xf32>, vector<16x128xf32>, vector<64x128xf32> -> vector<64x128xf32>
    %c64_20 = arith.constant 64 : index
    %c0_21 = arith.constant 0 : index
    %33 = vector.load %arg8[%c64_20, %c0_21] : memref<512x1xf32, #tpu.memory_space<vmem>>, vector<64x1xf32>
    %34 = vector.broadcast %33 : vector<64x1xf32> to vector<64x128xf32>
    %35 = arith.addf %32, %34 : vector<64x128xf32>
    %36 = vector.extract_strided_slice %19 {offsets = [1, 0], sizes = [1, 128], strides = [1, 1]} : vector<8x128xf32> to vector<1x128xf32>
    %37 = vector.broadcast %36 : vector<1x128xf32> to vector<64x128xf32>
    %38 = arith.mulf %37, %35 : vector<64x128xf32>
    %39 = arith.addf %30, %38 : vector<64x128xf32>
    %c128 = arith.constant 128 : index
    %c0_22 = arith.constant 0 : index
    %40 = vector.load %arg7[%c128, %c0_22] : memref<512x16xf32, #tpu.memory_space<vmem>>, vector<64x16xf32>
    %cst_23 = arith.constant dense<0.000000e+00> : vector<64x128xf32>
    %41 = tpu.matmul %40, %18, %cst_23 {dimension_numbers = #tpu.dot_dimension_numbers<[1], [0], [0], [1], [0, 0, 1, 1], [], []>} : vector<64x16xf32>, vector<16x128xf32>, vector<64x128xf32> -> vector<64x128xf32>
    %c128_24 = arith.constant 128 : index
    %c0_25 = arith.constant 0 : index
    %42 = vector.load %arg8[%c128_24, %c0_25] : memref<512x1xf32, #tpu.memory_space<vmem>>, vector<64x1xf32>
    %43 = vector.broadcast %42 : vector<64x1xf32> to vector<64x128xf32>
    %44 = arith.addf %41, %43 : vector<64x128xf32>
    %45 = vector.extract_strided_slice %19 {offsets = [2, 0], sizes = [1, 128], strides = [1, 1]} : vector<8x128xf32> to vector<1x128xf32>
    %46 = vector.broadcast %45 : vector<1x128xf32> to vector<64x128xf32>
    %47 = arith.mulf %46, %44 : vector<64x128xf32>
    %48 = arith.addf %39, %47 : vector<64x128xf32>
    %c192 = arith.constant 192 : index
    %c0_26 = arith.constant 0 : index
    %49 = vector.load %arg7[%c192, %c0_26] : memref<512x16xf32, #tpu.memory_space<vmem>>, vector<64x16xf32>
    %cst_27 = arith.constant dense<0.000000e+00> : vector<64x128xf32>
    %50 = tpu.matmul %49, %18, %cst_27 {dimension_numbers = #tpu.dot_dimension_numbers<[1], [0], [0], [1], [0, 0, 1, 1], [], []>} : vector<64x16xf32>, vector<16x128xf32>, vector<64x128xf32> -> vector<64x128xf32>
    %c192_28 = arith.constant 192 : index
    %c0_29 = arith.constant 0 : index
    %51 = vector.load %arg8[%c192_28, %c0_29] : memref<512x1xf32, #tpu.memory_space<vmem>>, vector<64x1xf32>
    %52 = vector.broadcast %51 : vector<64x1xf32> to vector<64x128xf32>
    %53 = arith.addf %50, %52 : vector<64x128xf32>
    %54 = vector.extract_strided_slice %19 {offsets = [3, 0], sizes = [1, 128], strides = [1, 1]} : vector<8x128xf32> to vector<1x128xf32>
    %55 = vector.broadcast %54 : vector<1x128xf32> to vector<64x128xf32>
    %56 = arith.mulf %55, %53 : vector<64x128xf32>
    %57 = arith.addf %48, %56 : vector<64x128xf32>
    %c256 = arith.constant 256 : index
    %c0_30 = arith.constant 0 : index
    %58 = vector.load %arg7[%c256, %c0_30] : memref<512x16xf32, #tpu.memory_space<vmem>>, vector<64x16xf32>
    %cst_31 = arith.constant dense<0.000000e+00> : vector<64x128xf32>
    %59 = tpu.matmul %58, %18, %cst_31 {dimension_numbers = #tpu.dot_dimension_numbers<[1], [0], [0], [1], [0, 0, 1, 1], [], []>} : vector<64x16xf32>, vector<16x128xf32>, vector<64x128xf32> -> vector<64x128xf32>
    %c256_32 = arith.constant 256 : index
    %c0_33 = arith.constant 0 : index
    %60 = vector.load %arg8[%c256_32, %c0_33] : memref<512x1xf32, #tpu.memory_space<vmem>>, vector<64x1xf32>
    %61 = vector.broadcast %60 : vector<64x1xf32> to vector<64x128xf32>
    %62 = arith.addf %59, %61 : vector<64x128xf32>
    %63 = vector.extract_strided_slice %19 {offsets = [4, 0], sizes = [1, 128], strides = [1, 1]} : vector<8x128xf32> to vector<1x128xf32>
    %64 = vector.broadcast %63 : vector<1x128xf32> to vector<64x128xf32>
    %65 = arith.mulf %64, %62 : vector<64x128xf32>
    %66 = arith.addf %57, %65 : vector<64x128xf32>
    %c320 = arith.constant 320 : index
    %c0_34 = arith.constant 0 : index
    %67 = vector.load %arg7[%c320, %c0_34] : memref<512x16xf32, #tpu.memory_space<vmem>>, vector<64x16xf32>
    %cst_35 = arith.constant dense<0.000000e+00> : vector<64x128xf32>
    %68 = tpu.matmul %67, %18, %cst_35 {dimension_numbers = #tpu.dot_dimension_numbers<[1], [0], [0], [1], [0, 0, 1, 1], [], []>} : vector<64x16xf32>, vector<16x128xf32>, vector<64x128xf32> -> vector<64x128xf32>
    %c320_36 = arith.constant 320 : index
    %c0_37 = arith.constant 0 : index
    %69 = vector.load %arg8[%c320_36, %c0_37] : memref<512x1xf32, #tpu.memory_space<vmem>>, vector<64x1xf32>
    %70 = vector.broadcast %69 : vector<64x1xf32> to vector<64x128xf32>
    %71 = arith.addf %68, %70 : vector<64x128xf32>
    %72 = vector.extract_strided_slice %19 {offsets = [5, 0], sizes = [1, 128], strides = [1, 1]} : vector<8x128xf32> to vector<1x128xf32>
    %73 = vector.broadcast %72 : vector<1x128xf32> to vector<64x128xf32>
    %74 = arith.mulf %73, %71 : vector<64x128xf32>
    %75 = arith.addf %66, %74 : vector<64x128xf32>
    %c384 = arith.constant 384 : index
    %c0_38 = arith.constant 0 : index
    %76 = vector.load %arg7[%c384, %c0_38] : memref<512x16xf32, #tpu.memory_space<vmem>>, vector<64x16xf32>
    %cst_39 = arith.constant dense<0.000000e+00> : vector<64x128xf32>
    %77 = tpu.matmul %76, %18, %cst_39 {dimension_numbers = #tpu.dot_dimension_numbers<[1], [0], [0], [1], [0, 0, 1, 1], [], []>} : vector<64x16xf32>, vector<16x128xf32>, vector<64x128xf32> -> vector<64x128xf32>
    %c384_40 = arith.constant 384 : index
    %c0_41 = arith.constant 0 : index
    %78 = vector.load %arg8[%c384_40, %c0_41] : memref<512x1xf32, #tpu.memory_space<vmem>>, vector<64x1xf32>
    %79 = vector.broadcast %78 : vector<64x1xf32> to vector<64x128xf32>
    %80 = arith.addf %77, %79 : vector<64x128xf32>
    %81 = vector.extract_strided_slice %19 {offsets = [6, 0], sizes = [1, 128], strides = [1, 1]} : vector<8x128xf32> to vector<1x128xf32>
    %82 = vector.broadcast %81 : vector<1x128xf32> to vector<64x128xf32>
    %83 = arith.mulf %82, %80 : vector<64x128xf32>
    %84 = arith.addf %75, %83 : vector<64x128xf32>
    %c448 = arith.constant 448 : index
    %c0_42 = arith.constant 0 : index
    %85 = vector.load %arg7[%c448, %c0_42] : memref<512x16xf32, #tpu.memory_space<vmem>>, vector<64x16xf32>
    %cst_43 = arith.constant dense<0.000000e+00> : vector<64x128xf32>
    %86 = tpu.matmul %85, %18, %cst_43 {dimension_numbers = #tpu.dot_dimension_numbers<[1], [0], [0], [1], [0, 0, 1, 1], [], []>} : vector<64x16xf32>, vector<16x128xf32>, vector<64x128xf32> -> vector<64x128xf32>
    %c448_44 = arith.constant 448 : index
    %c0_45 = arith.constant 0 : index
    %87 = vector.load %arg8[%c448_44, %c0_45] : memref<512x1xf32, #tpu.memory_space<vmem>>, vector<64x1xf32>
    %88 = vector.broadcast %87 : vector<64x1xf32> to vector<64x128xf32>
    %89 = arith.addf %86, %88 : vector<64x128xf32>
    %90 = vector.extract_strided_slice %19 {offsets = [7, 0], sizes = [1, 128], strides = [1, 1]} : vector<8x128xf32> to vector<1x128xf32>
    %91 = vector.broadcast %90 : vector<1x128xf32> to vector<64x128xf32>
    %92 = arith.mulf %91, %89 : vector<64x128xf32>
    %93 = arith.addf %84, %92 : vector<64x128xf32>
    %cst_46 = arith.constant 0.000000e+00 : f32
    %94 = vector.broadcast %cst_46 : f32 to vector<16x128xf32>
    %95 = vector.extract_strided_slice %20 {offsets = [0, 0], sizes = [1, 128], strides = [1, 1]} : vector<4x128xf32> to vector<1x128xf32>
    %96 = vector.extract_strided_slice %93 {offsets = [0, 0], sizes = [16, 128], strides = [1, 1]} : vector<64x128xf32> to vector<16x128xf32>
    %97 = vector.broadcast %95 : vector<1x128xf32> to vector<16x128xf32>
    %98 = arith.mulf %97, %96 : vector<16x128xf32>
    %99 = arith.addf %94, %98 : vector<16x128xf32>
    %100 = vector.extract_strided_slice %20 {offsets = [1, 0], sizes = [1, 128], strides = [1, 1]} : vector<4x128xf32> to vector<1x128xf32>
    %101 = vector.extract_strided_slice %93 {offsets = [16, 0], sizes = [16, 128], strides = [1, 1]} : vector<64x128xf32> to vector<16x128xf32>
    %102 = vector.broadcast %100 : vector<1x128xf32> to vector<16x128xf32>
    %103 = arith.mulf %102, %101 : vector<16x128xf32>
    %104 = arith.addf %99, %103 : vector<16x128xf32>
    %105 = vector.extract_strided_slice %20 {offsets = [2, 0], sizes = [1, 128], strides = [1, 1]} : vector<4x128xf32> to vector<1x128xf32>
    %106 = vector.extract_strided_slice %93 {offsets = [32, 0], sizes = [16, 128], strides = [1, 1]} : vector<64x128xf32> to vector<16x128xf32>
    %107 = vector.broadcast %105 : vector<1x128xf32> to vector<16x128xf32>
    %108 = arith.mulf %107, %106 : vector<16x128xf32>
    %109 = arith.addf %104, %108 : vector<16x128xf32>
    %110 = vector.extract_strided_slice %20 {offsets = [3, 0], sizes = [1, 128], strides = [1, 1]} : vector<4x128xf32> to vector<1x128xf32>
    %111 = vector.extract_strided_slice %93 {offsets = [48, 0], sizes = [16, 128], strides = [1, 1]} : vector<64x128xf32> to vector<16x128xf32>
    %112 = vector.broadcast %110 : vector<1x128xf32> to vector<16x128xf32>
    %113 = arith.mulf %112, %111 : vector<16x128xf32>
    %114 = arith.addf %109, %113 : vector<16x128xf32>
    %cst_47 = arith.constant 0.176776692 : f32
    %115 = vector.broadcast %cst_47 : f32 to vector<16x128xf32>
    %116 = arith.mulf %115, %114 : vector<16x128xf32>
    %c128_i32 = arith.constant 128 : i32
    %117 = arith.muli %arg0, %c128_i32 : i32
    %118 = tpu.iota {dimensions = array<i32: 1>} : vector<128x128xi32>
    %119 = vector.broadcast %117 : i32 to vector<128x128xi32>
    %120 = arith.addi %119, %118 : vector<128x128xi32>
    %c0_48 = arith.constant 0 : index
    %c0_49 = arith.constant 0 : index
    %121 = vector.load %arg2[%c0_48, %c0_49] : memref<128x1xi32, #tpu.memory_space<vmem>>, vector<128x1xi32>
    %122 = vector.broadcast %121 : vector<128x1xi32> to vector<128x128xi32>
    %123 = arith.cmpi eq, %120, %122 : vector<128x128xi32>
    %cst_50 = arith.constant 1.000000e+00 : f32
    %cst_51 = arith.constant 0.000000e+00 : f32
    %124 = vector.broadcast %cst_50 : f32 to vector<128x128xf32>
    %125 = vector.broadcast %cst_51 : f32 to vector<128x128xf32>
    %126 = arith.select %123, %124, %125 : vector<128x128xi1>, vector<128x128xf32>
    %c0_52 = arith.constant 0 : index
    %c0_53 = arith.constant 0 : index
    %127 = vector.load %arg11[%c0_52, %c0_53] : memref<16x128xf32, #tpu.memory_space<vmem>>, vector<16x128xf32>
    %cst_54 = arith.constant dense<0.000000e+00> : vector<16x128xf32>
    %128 = tpu.matmul %116, %126, %cst_54 {dimension_numbers = #tpu.dot_dimension_numbers<[1], [0], [0], [1], [0, 0, 1, 1], [], []>} : vector<16x128xf32>, vector<128x128xf32>, vector<16x128xf32> -> vector<16x128xf32>
    %129 = arith.addf %127, %128 : vector<16x128xf32>
    %c0_55 = arith.constant 0 : index
    %c0_56 = arith.constant 0 : index
    %130 = vector.load %arg11[%c0_55, %c0_56] : memref<16x128xf32, #tpu.memory_space<vmem>>, vector<16x128xf32>
    tpu.vector_store %arg11[%c0_55, %c0_56], %129 {strides = array<i32>} : memref<16x128xf32, #tpu.memory_space<vmem>>, vector<16x128xf32>,
    %c0_i32_57 = arith.constant 0 : i32
    %131 = arith.cmpi eq, %arg1, %c0_i32_57 : i32
    %132 = arith.extui %131 : i1 to i32
    %c0_i32_58 = arith.constant 0 : i32
    %133 = arith.cmpi ne, %132, %c0_i32_58 : i32
    scf.if %133 {
      %c0_59 = arith.constant 0 : index
      %c0_60 = arith.constant 0 : index
      %134 = vector.load %arg11[%c0_59, %c0_60] : memref<16x128xf32, #tpu.memory_space<vmem>>, vector<16x128xf32>
      %c0_61 = arith.constant 0 : index
      %c0_62 = arith.constant 0 : index
      %135 = vector.load %arg9[%c0_61, %c0_62] : memref<1x128xf32, #tpu.memory_space<vmem>>, vector<1x128xf32>
      %136 = vector.broadcast %135 : vector<1x128xf32> to vector<16x128xf32>
      %137 = arith.mulf %134, %136 : vector<16x128xf32>
      %c0_63 = arith.constant 0 : index
      %c0_64 = arith.constant 0 : index
      %138 = vector.load %arg10[%c0_63, %c0_64] : memref<16x128xf32, #tpu.memory_space<vmem>>, vector<16x128xf32>
      %139 = arith.addf %137, %138 : vector<16x128xf32>
      %c0_65 = arith.constant 0 : index
      %c0_66 = arith.constant 0 : index
      %140 = vector.load %arg11[%c0_65, %c0_66] : memref<16x128xf32, #tpu.memory_space<vmem>>, vector<16x128xf32>
      tpu.vector_store %arg11[%c0_65, %c0_66], %139 {strides = array<i32>} : memref<16x128xf32, #tpu.memory_space<vmem>>, vector<16x128xf32>,
    } else {
    }
    return
  }
  func.func @transform_0(%arg0: i32, %arg1: i32) -> (i32, i32) {
    %c0_i32 = arith.constant 0 : i32
    %c0_i32_0 = arith.constant 0 : i32
    return %arg1, %c0_i32 : i32, i32
  }
  func.func @transform_1(%arg0: i32, %arg1: i32) -> (i32, i32) {
    %c0_i32 = arith.constant 0 : i32
    %c0_i32_0 = arith.constant 0 : i32
    return %c0_i32, %arg1 : i32, i32
  }
  func.func @transform_2(%arg0: i32, %arg1: i32) -> (i32, i32) {
    %c0_i32 = arith.constant 0 : i32
    %c0_i32_0 = arith.constant 0 : i32
    return %c0_i32, %arg1 : i32, i32
  }
  func.func @transform_3(%arg0: i32, %arg1: i32) -> (i32, i32) {
    %c0_i32 = arith.constant 0 : i32
    %c0_i32_0 = arith.constant 0 : i32
    %c0_i32_1 = arith.constant 0 : i32
    return %c0_i32, %c0_i32_0 : i32, i32
  }
  func.func @transform_4(%arg0: i32, %arg1: i32) -> (i32, i32) {
    %c0_i32 = arith.constant 0 : i32
    %c0_i32_0 = arith.constant 0 : i32
    %c0_i32_1 = arith.constant 0 : i32
    return %c0_i32, %c0_i32_0 : i32, i32
  }
  func.func @transform_5(%arg0: i32, %arg1: i32) -> (i32, i32) {
    %c0_i32 = arith.constant 0 : i32
    %c0_i32_0 = arith.constant 0 : i32
    %c0_i32_1 = arith.constant 0 : i32
    return %c0_i32, %c0_i32_0 : i32, i32
  }
  func.func @transform_6(%arg0: i32, %arg1: i32) -> (i32, i32) {
    %c0_i32 = arith.constant 0 : i32
    %c0_i32_0 = arith.constant 0 : i32
    %c0_i32_1 = arith.constant 0 : i32
    return %c0_i32, %c0_i32_0 : i32, i32
  }
  func.func @transform_7(%arg0: i32, %arg1: i32) -> (i32, i32) {
    %c0_i32 = arith.constant 0 : i32
    %c0_i32_0 = arith.constant 0 : i32
    return %c0_i32, %arg0 : i32, i32
  }
  func.func @transform_8(%arg0: i32, %arg1: i32) -> (i32, i32) {
    %c0_i32 = arith.constant 0 : i32
    %c0_i32_0 = arith.constant 0 : i32
    return %c0_i32, %arg0 : i32, i32
  }
  func.func @transform_9(%arg0: i32, %arg1: i32) -> (i32, i32) {
    %c0_i32 = arith.constant 0 : i32
    %c0_i32_0 = arith.constant 0 : i32
    return %c0_i32, %arg0 : i32, i32
  }
}

</mosaic_0001>

<llo_original>
// kernel: tpu_custom_call.1
$region0: #{tpu_custom_call.1}
  #allocation0 [shape = 'u32[]', space=smem, size = 0x4, offset = 0x4, fixed_abs, tag = 'smem constant byte address 0x4 - core index']
  #allocation1 [shape = 'u32[144,128]{1,0:T(1,128)}', space=vmem, size = 0x12000, scoped, tag = 'internal scratch']
  %s0 = inlined_call_operand.vmem [shape: s32[128,1], index: 0, kind: input, shape index: {}]
  %s1 = inlined_call_operand.vmem [shape: f32[12,128], index: 1, kind: input, shape index: {}]
  %s2 = inlined_call_operand.vmem [shape: f32[16,128], index: 2, kind: input, shape index: {}]
  %s3 = inlined_call_operand.vmem [shape: f32[16,16], index: 3, kind: input, shape index: {}]
  %s4 = inlined_call_operand.vmem [shape: f32[16,1], index: 4, kind: input, shape index: {}]
  %s5 = inlined_call_operand.vmem [shape: f32[512,16], index: 5, kind: input, shape index: {}]
  %s6 = inlined_call_operand.vmem [shape: f32[512,1], index: 6, kind: input, shape index: {}]
  %s7 = inlined_call_operand.vmem [shape: f32[1,128], index: 7, kind: input, shape index: {}]
  %s8 = inlined_call_operand.vmem [shape: f32[16,128], index: 8, kind: input, shape index: {}]
  %s9 = inlined_call_operand.hbm [shape: f32[16,128], index: 9, kind: output, shape index: {}]
  %s10 = sld [smem:[#allocation0]]
  $region54: #{tpu_custom_call.1} parent=0
    _
  %s12 = ssub.s32 1, %s10
  %s13 = scalar_select 0, %s12, %s10
  $region1: #{tpu_custom_call.1} parent=0
    #allocation2 [shape = 'u8[8192]{0}', space=vmem, size = 0x2000, scoped, tag = 'output window, operand 0, single buffered']
    #allocation3 [shape = 's32[1]{0}', space=sflag, size = 0x4, scoped, tag = 'scoped memory for tpu_custom_call.1']
    %14 = vsyncpa [#allocation3], 0
    // Predicated region
    $region2: #{tpu_custom_call.1} parent=1 // pred_check
      _
    $region3: #{tpu_custom_call.1} parent=1 // pred_check_branch
      %16 = sbr.rel (0) target = $region5
    $region4: #{tpu_custom_call.1} parent=1 // pred_region
      _
    $region5: #{tpu_custom_call.1} parent=1 // pred_fallthru
      _
    // Predicated region
    $region6: #{tpu_custom_call.1} parent=1 // pred_check
      _
    $region7: #{tpu_custom_call.1} parent=1 // pred_check_branch
      %18 = sbr.rel (0) target = $region9
    $region8: #{tpu_custom_call.1} parent=1 // pred_region
      _
    $region9: #{tpu_custom_call.1} parent=1 // pred_fallthru
      _
    // Predicated region
    $region10: #{tpu_custom_call.1} parent=1 // pred_check
      _
    $region11: #{tpu_custom_call.1} parent=1 // pred_check_branch
      %20 = sbr.rel (0) target = $region13
    $region12: #{tpu_custom_call.1} parent=1 // pred_region
      _
    $region13: #{tpu_custom_call.1} parent=1 // pred_fallthru
      _
    // Predicated region
    $region14: #{tpu_custom_call.1} parent=1 // pred_check
      _
    $region15: #{tpu_custom_call.1} parent=1 // pred_check_branch
      %22 = sbr.rel (0) target = $region17
    $region16: #{tpu_custom_call.1} parent=1 // pred_region
      _
    $region17: #{tpu_custom_call.1} parent=1 // pred_fallthru
      _
    // Predicated region
    $region18: #{tpu_custom_call.1} parent=1 // pred_check
      _
    $region19: #{tpu_custom_call.1} parent=1 // pred_check_branch
      %24 = sbr.rel (0) target = $region21
    $region20: #{tpu_custom_call.1} parent=1 // pred_region
      _
    $region21: #{tpu_custom_call.1} parent=1 // pred_fallthru
      _
    // Predicated region
    $region22: #{tpu_custom_call.1} parent=1 // pred_check
      _
    $region23: #{tpu_custom_call.1} parent=1 // pred_check_branch
      %26 = sbr.rel (0) target = $region25
    $region24: #{tpu_custom_call.1} parent=1 // pred_region
      _
    $region25: #{tpu_custom_call.1} parent=1 // pred_fallthru
      _
    // Predicated region
    $region26: #{tpu_custom_call.1} parent=1 // pred_check
      _
    $region27: #{tpu_custom_call.1} parent=1 // pred_check_branch
      %28 = sbr.rel (0) target = $region29
    $region28: #{tpu_custom_call.1} parent=1 // pred_region
      _
    $region29: #{tpu_custom_call.1} parent=1 // pred_fallthru
      _
    // Predicated region
    $region30: #{tpu_custom_call.1} parent=1 // pred_check
      _
    $region31: #{tpu_custom_call.1} parent=1 // pred_check_branch
      %30 = sbr.rel (0) target = $region33
    $region32: #{tpu_custom_call.1} parent=1 // pred_region
      _
    $region33: #{tpu_custom_call.1} parent=1 // pred_fallthru
      _
    // Predicated region
    $region34: #{tpu_custom_call.1} parent=1 // pred_check
      _
    $region35: #{tpu_custom_call.1} parent=1 // pred_check_branch
      %32 = sbr.rel (0) target = $region37
    $region36: #{tpu_custom_call.1} parent=1 // pred_region
      _
    $region37: #{tpu_custom_call.1} parent=1 // pred_fallthru
      _
    %p33 = scmp.eq.s32.totalorder 0, 0
    // Predicated region
    $region38: #{tpu_custom_call.1} parent=1 // pred_check
      %p34 = pneg %p33
    $region39: #{tpu_custom_call.1} parent=1 // pred_check_branch
      %36 = sbr.rel (%p34) target = $region41
    $region40: #{tpu_custom_call.1} parent=1 // pred_region
      %37 = vst [vmem:[#allocation2] sm:$0xff] 0.0
      %38 = vst [vmem:[#allocation2 + $0x8] sm:$0xff] 0.0
    $region41: #{tpu_custom_call.1} parent=1 // pred_fallthru
      _
    %v39 = vld [vmem:[%s3] sm:$0xff]
    %v40 = vld [vmem:[%s3 + $0x8] sm:$0xff]
    %v41 = vld [vmem:[%s2] sm:$0xff]
    %v42 = vld [vmem:[%s2 + $0x8] sm:$0xff]
    %v43 = vld [vmem:[%s4] sm:$0xff]
    %v44 = vld [vmem:[%s4 + $0x8] sm:$0xff]
    %46 = vset.pattern.permute.xlu0 0
    %47 = vperm.xlu0 %46, %v43
    %v48 = vpop.permute.xlu0 %47
    %51 = vset.pattern.permute.xlu0 0
    %52 = vperm.xlu0 %51, %v44
    %v53 = vpop.permute.xlu0 %52
    %vm55 = vcmask 130048
    %v57 = vsel %vm55, %v39, 0
    %v60 = vsel %vm55, %v40, 0
    %62 = vmatprep.subr.mxu0 0.0
    %63 = vmatpush1.msra.mxu0 %v41
    %64 = vmatprep.subr.mxu0 0.0
    %65 = vmatpush1.msra.mxu0 %v42
    %66 = vmatprep.subr.mxu0 0.0
    %67 = vmatpush1.msra.mxu0 0.0
    %68 = vmatprep.subr.mxu0 0.0
    %69 = vmatpush1.msra.mxu0 0.0
    %70 = vmatprep.subr.mxu0 0.0
    %71 = vmatpush1.msra.mxu0 0.0
    %72 = vmatprep.subr.mxu0 0.0
    %73 = vmatpush1.msra.mxu0 0.0
    %74 = vmatprep.subr.mxu0 0.0
    %75 = vmatpush1.msra.mxu0 0.0
    %76 = vmatprep.subr.mxu0 0.0
    %77 = vmatpush1.msra.mxu0 0.0
    %78 = vmatprep.subr.mxu0 0.0
    %79 = vmatpush1.msra.mxu0 0.0
    %80 = vmatprep.subr.mxu0 0.0
    %81 = vmatpush1.msra.mxu0 0.0
    %82 = vmatprep.subr.mxu0 0.0
    %83 = vmatpush1.msra.mxu0 0.0
    %84 = vmatprep.subr.mxu0 0.0
    %85 = vmatpush1.msra.mxu0 0.0
    %86 = vmatprep.subr.mxu0 0.0
    %87 = vmatpush1.msra.mxu0 0.0
    %88 = vmatprep.subr.mxu0 0.0
    %89 = vmatpush1.msra.mxu0 0.0
    %90 = vmatprep.subr.mxu0 0.0
    %91 = vmatpush1.msra.mxu0 0.0
    %92 = vmatprep.subr.mxu0 0.0
    %93 = vmatpush1.msra.mxu0 0.0
    %94 = vmatprep.subr.mxu0 0.0
    %95 = vmatpush1.msra.mxu0 0.0
    %96 = vmatprep.subr.mxu0 0.0
    %97 = vmatpush1.msra.mxu0 0.0
    %98 = vmatprep.subr.mxu0 0.0
    %99 = vmatpush1.msra.mxu0 0.0
    %100 = vmatprep.subr.mxu0 0.0
    %101 = vmatpush1.msra.mxu0 0.0
    %102 = vmatprep.subr.mxu0 0.0
    %103 = vmatpush1.msra.mxu0 0.0
    %104 = vmatprep.subr.mxu0 0.0
    %105 = vmatpush1.msra.mxu0 0.0
    %106 = vmatprep.subr.mxu0 0.0
    %107 = vmatpush1.msra.mxu0 0.0
    %108 = vmatprep.subr.mxu0 0.0
    %109 = vmatpush1.msra.mxu0 0.0
    %110 = vmatprep.subr.mxu0 0.0
    %111 = vmatpush1.msra.mxu0 0.0
    %112 = vmatprep.subr.mxu0 0.0
    %113 = vmatpush1.msra.mxu0 0.0
    %114 = vmatprep.subr.mxu0 0.0
    %115 = vmatpush1.msra.mxu0 0.0
    %116 = vmatprep.subr.mxu0 0.0
    %117 = vmatpush1.msra.mxu0 0.0
    %118 = vmatprep.subr.mxu0 0.0
    %119 = vmatpush1.msra.mxu0 0.0
    %120 = vmatprep.subr.mxu0 0.0
    %121 = vmatpush1.msra.mxu0 0.0
    %122 = vmatprep.subr.mxu0 0.0
    %123 = vmatpush1.msra.mxu0 0.0
    %124 = vmatprep.subr.mxu0 0.0
    %125 = vmatpush1.msra.mxu0 0.0
    %126 = vmatprep.mubr.f32.mxu0 0.0
    %127 = vmatmul.mubr.f32.gmra.mrb[0].mxu0 %v57
    %v128 = vpop.f32.mrb[0].mxu0
    %v129 = vadd.f32 %v48, %v128
    %v130 = vpop.f32.mrb[0].mxu0
    %131 = vmatprep.mubr.f32.mxu0 0.0
    %132 = vmatmul.mubr.f32.gmra.mrb[0].mxu0 %v60
    %v133 = vpop.f32.mrb[0].mxu0
    %v134 = vadd.f32 %v53, %v133
    %v135 = vpop.f32.mrb[0].mxu0
    %136 = vdwg.mxu0
    %v137 = vmax.f32 %v129, 0.0
    %v138 = vmax.f32 %v134, 0.0
    %v139 = vand.u32 2147483647, %v129
    %v140 = vand.u32 2147483647, %v134
    %v141 = vsub.f32 0.0, %v139
    %v142 = vsub.f32 0.0, %v140
    %v143 = vmul.f32 %v141, 1.442695
    %v144 = vpow.pop %v143
    %v145 = vmul.f32 %v142, 1.442695
    %v146 = vpow.pop %v145
    %v147 = vadd.f32 %v144, 1.0
    %v148 = vadd.f32 %v146, 1.0
    %v149 = vlog2.pop %v147
    %v150 = vmul.f32 %v149, 0.6931472
    %v151 = vlog2.pop %v148
    %v152 = vmul.f32 %v151, 0.6931472
    %v153 = vadd.f32 %v137, %v150
    %v154 = vadd.f32 %v138, %v152
    %v155 = vld [vmem:[%s1] sm:$0xff]
    %v156 = vld [vmem:[%s1 + $0x8] sm:$0xf]
    %v157 = vld [vmem:[%s5] sm:$0xff]
    %v158 = vld [vmem:[%s5 + $0x8] sm:$0xff]
    %v159 = vld [vmem:[%s5 + $0x10] sm:$0xff]
    %v160 = vld [vmem:[%s5 + $0x18] sm:$0xff]
    %v161 = vld [vmem:[%s5 + $0x20] sm:$0xff]
    %v162 = vld [vmem:[%s5 + $0x28] sm:$0xff]
    %v163 = vld [vmem:[%s5 + $0x30] sm:$0xff]
    %v164 = vld [vmem:[%s5 + $0x38] sm:$0xff]
    %v165 = vld [vmem:[%s6] sm:$0xff]
    %v166 = vld [vmem:[%s6 + $0x8] sm:$0xff]
    %v167 = vld [vmem:[%s6 + $0x10] sm:$0xff]
    %v168 = vld [vmem:[%s6 + $0x18] sm:$0xff]
    %v169 = vld [vmem:[%s6 + $0x20] sm:$0xff]
    %v170 = vld [vmem:[%s6 + $0x28] sm:$0xff]
    %v171 = vld [vmem:[%s6 + $0x30] sm:$0xff]
    %v172 = vld [vmem:[%s6 + $0x38] sm:$0xff]
    %174 = vset.pattern.permute.xlu0 0
    %175 = vperm.xlu0 %174, %v165
    %v176 = vpop.permute.xlu0 %175
    %179 = vset.pattern.permute.xlu0 0
    %180 = vperm.xlu0 %179, %v166
    %v181 = vpop.permute.xlu0 %180
    %184 = vset.pattern.permute.xlu0 0
    %185 = vperm.xlu0 %184, %v167
    %v186 = vpop.permute.xlu0 %185
    %189 = vset.pattern.permute.xlu0 0
    %190 = vperm.xlu0 %189, %v168
    %v191 = vpop.permute.xlu0 %190
    %194 = vset.pattern.permute.xlu0 0
    %195 = vperm.xlu0 %194, %v169
    %v196 = vpop.permute.xlu0 %195
    %199 = vset.pattern.permute.xlu0 0
    %200 = vperm.xlu0 %199, %v170
    %v201 = vpop.permute.xlu0 %200
    %204 = vset.pattern.permute.xlu0 0
    %205 = vperm.xlu0 %204, %v171
    %v206 = vpop.permute.xlu0 %205
    %209 = vset.pattern.permute.xlu0 0
    %210 = vperm.xlu0 %209, %v172
    %v211 = vpop.permute.xlu0 %210
    %v214 = vsel %vm55, %v157, 0
    %v217 = vsel %vm55, %v158, 0
    %v220 = vsel %vm55, %v159, 0
    %v223 = vsel %vm55, %v160, 0
    %v226 = vsel %vm55, %v161, 0
    %v229 = vsel %vm55, %v162, 0
    %v232 = vsel %vm55, %v163, 0
    %v235 = vsel %vm55, %v164, 0
    %237 = vmatprep.subr.mxu0 0.0
    %238 = vmatpush1.msra.mxu0 %v153
    %239 = vmatprep.subr.mxu0 0.0
    %240 = vmatpush1.msra.mxu0 %v154
    %241 = vmatprep.subr.mxu0 0.0
    %242 = vmatpush1.msra.mxu0 0.0
    %243 = vmatprep.subr.mxu0 0.0
    %244 = vmatpush1.msra.mxu0 0.0
    %245 = vmatprep.subr.mxu0 0.0
    %246 = vmatpush1.msra.mxu0 0.0
    %247 = vmatprep.subr.mxu0 0.0
    %248 = vmatpush1.msra.mxu0 0.0
    %249 = vmatprep.subr.mxu0 0.0
    %250 = vmatpush1.msra.mxu0 0.0
    %251 = vmatprep.subr.mxu0 0.0
    %252 = vmatpush1.msra.mxu0 0.0
    %253 = vmatprep.subr.mxu0 0.0
    %254 = vmatpush1.msra.mxu0 0.0
    %255 = vmatprep.subr.mxu0 0.0
    %256 = vmatpush1.msra.mxu0 0.0
    %257 = vmatprep.subr.mxu0 0.0
    %258 = vmatpush1.msra.mxu0 0.0
    %259 = vmatprep.subr.mxu0 0.0
    %260 = vmatpush1.msra.mxu0 0.0
    %261 = vmatprep.subr.mxu0 0.0
    %262 = vmatpush1.msra.mxu0 0.0
    %263 = vmatprep.subr.mxu0 0.0
    %264 = vmatpush1.msra.mxu0 0.0
    %265 = vmatprep.subr.mxu0 0.0
    %266 = vmatpush1.msra.mxu0 0.0
    %267 = vmatprep.subr.mxu0 0.0
    %268 = vmatpush1.msra.mxu0 0.0
    %269 = vmatprep.subr.mxu0 0.0
    %270 = vmatpush1.msra.mxu0 0.0
    %271 = vmatprep.subr.mxu0 0.0
    %272 = vmatpush1.msra.mxu0 0.0
    %273 = vmatprep.subr.mxu0 0.0
    %274 = vmatpush1.msra.mxu0 0.0
    %275 = vmatprep.subr.mxu0 0.0
    %276 = vmatpush1.msra.mxu0 0.0
    %277 = vmatprep.subr.mxu0 0.0
    %278 = vmatpush1.msra.mxu0 0.0
    %279 = vmatprep.subr.mxu0 0.0
    %280 = vmatpush1.msra.mxu0 0.0
    %281 = vmatprep.subr.mxu0 0.0
    %282 = vmatpush1.msra.mxu0 0.0
    %283 = vmatprep.subr.mxu0 0.0
    %284 = vmatpush1.msra.mxu0 0.0
    %285 = vmatprep.subr.mxu0 0.0
    %286 = vmatpush1.msra.mxu0 0.0
    %287 = vmatprep.subr.mxu0 0.0
    %288 = vmatpush1.msra.mxu0 0.0
    %289 = vmatprep.subr.mxu0 0.0
    %290 = vmatpush1.msra.mxu0 0.0
    %291 = vmatprep.subr.mxu0 0.0
    %292 = vmatpush1.msra.mxu0 0.0
    %293 = vmatprep.subr.mxu0 0.0
    %294 = vmatpush1.msra.mxu0 0.0
    %295 = vmatprep.subr.mxu0 0.0
    %296 = vmatpush1.msra.mxu0 0.0
    %297 = vmatprep.subr.mxu0 0.0
    %298 = vmatpush1.msra.mxu0 0.0
    %299 = vmatprep.subr.mxu0 0.0
    %300 = vmatpush1.msra.mxu0 0.0
    %301 = vmatprep.mubr.f32.mxu0 0.0
    %302 = vmatmul.mubr.f32.gmra.mrb[0].mxu0 %v214
    %v303 = vpop.f32.mrb[0].mxu0
    %v304 = vadd.f32 %v176, %v303
    %v305 = vpop.f32.mrb[0].mxu0
    %306 = vmatprep.mubr.f32.mxu0 0.0
    %307 = vmatmul.mubr.f32.gmra.mrb[0].mxu0 %v217
    %v308 = vpop.f32.mrb[0].mxu0
    %v309 = vadd.f32 %v181, %v308
    %v310 = vpop.f32.mrb[0].mxu0
    %311 = vmatprep.mubr.f32.mxu0 0.0
    %312 = vmatmul.mubr.f32.gmra.mrb[0].mxu0 %v220
    %v313 = vpop.f32.mrb[0].mxu0
    %v314 = vadd.f32 %v186, %v313
    %v315 = vpop.f32.mrb[0].mxu0
    %316 = vmatprep.mubr.f32.mxu0 0.0
    %317 = vmatmul.mubr.f32.gmra.mrb[0].mxu0 %v223
    %v318 = vpop.f32.mrb[0].mxu0
    %v319 = vadd.f32 %v191, %v318
    %v320 = vpop.f32.mrb[0].mxu0
    %321 = vmatprep.mubr.f32.mxu0 0.0
    %322 = vmatmul.mubr.f32.gmra.mrb[0].mxu0 %v226
    %v323 = vpop.f32.mrb[0].mxu0
    %v324 = vadd.f32 %v196, %v323
    %v325 = vpop.f32.mrb[0].mxu0
    %326 = vmatprep.mubr.f32.mxu0 0.0
    %327 = vmatmul.mubr.f32.gmra.mrb[0].mxu0 %v229
    %v328 = vpop.f32.mrb[0].mxu0
    %v329 = vadd.f32 %v201, %v328
    %v330 = vpop.f32.mrb[0].mxu0
    %331 = vmatprep.mubr.f32.mxu0 0.0
    %332 = vmatmul.mubr.f32.gmra.mrb[0].mxu0 %v232
    %v333 = vpop.f32.mrb[0].mxu0
    %v334 = vadd.f32 %v206, %v333
    %v335 = vpop.f32.mrb[0].mxu0
    %336 = vmatprep.mubr.f32.mxu0 0.0
    %337 = vmatmul.mubr.f32.gmra.mrb[0].mxu0 %v235
    %v338 = vpop.f32.mrb[0].mxu0
    %v339 = vadd.f32 %v211, %v338
    %v340 = vpop.f32.mrb[0].mxu0
    %341 = vdwg.mxu0
    %v342 = vlaneseq
    %v343 = vshrl.u32 %v342, 7
    %v344 = vsub.s32 0, %v343
    %v345 = vrot.slane %v155, %v344
    %v346 = vmul.f32 %v345, %v304
    %v347 = vmul.f32 %v345, %v309
    %v348 = vmul.f32 %v345, %v314
    %v349 = vmul.f32 %v345, %v319
    %v350 = vmul.f32 %v345, %v324
    %v351 = vmul.f32 %v345, %v329
    %v352 = vmul.f32 %v345, %v334
    %v353 = vmul.f32 %v345, %v339
    %v354 = vadd.f32 %v346, 0.0
    %v355 = vadd.f32 %v347, 0.0
    %v356 = vadd.f32 %v348, 0.0
    %v357 = vadd.f32 %v349, 0.0
    %v358 = vadd.f32 %v350, 0.0
    %v359 = vadd.f32 %v351, 0.0
    %v360 = vadd.f32 %v352, 0.0
    %v361 = vadd.f32 %v353, 0.0
    %v362 = vld [vmem:[%s5 + $0x40] sm:$0xff]
    %v363 = vld [vmem:[%s5 + $0x48] sm:$0xff]
    %v364 = vld [vmem:[%s5 + $0x50] sm:$0xff]
    %v365 = vld [vmem:[%s5 + $0x58] sm:$0xff]
    %v366 = vld [vmem:[%s5 + $0x60] sm:$0xff]
    %v367 = vld [vmem:[%s5 + $0x68] sm:$0xff]
    %v368 = vld [vmem:[%s5 + $0x70] sm:$0xff]
    %v369 = vld [vmem:[%s5 + $0x78] sm:$0xff]
    %v370 = vld [vmem:[%s6 + $0x40] sm:$0xff]
    %v371 = vld [vmem:[%s6 + $0x48] sm:$0xff]
    %v372 = vld [vmem:[%s6 + $0x50] sm:$0xff]
    %v373 = vld [vmem:[%s6 + $0x58] sm:$0xff]
    %v374 = vld [vmem:[%s6 + $0x60] sm:$0xff]
    %v375 = vld [vmem:[%s6 + $0x68] sm:$0xff]
    %v376 = vld [vmem:[%s6 + $0x70] sm:$0xff]
    %v377 = vld [vmem:[%s6 + $0x78] sm:$0xff]
    %379 = vset.pattern.permute.xlu0 0
    %380 = vperm.xlu0 %379, %v370
    %v381 = vpop.permute.xlu0 %380
    %384 = vset.pattern.permute.xlu0 0
    %385 = vperm.xlu0 %384, %v371
    %v386 = vpop.permute.xlu0 %385
    %389 = vset.pattern.permute.xlu0 0
    %390 = vperm.xlu0 %389, %v372
    %v391 = vpop.permute.xlu0 %390
    %394 = vset.pattern.permute.xlu0 0
    %395 = vperm.xlu0 %394, %v373
    %v396 = vpop.permute.xlu0 %395
    %399 = vset.pattern.permute.xlu0 0
    %400 = vperm.xlu0 %399, %v374
    %v401 = vpop.permute.xlu0 %400
    %404 = vset.pattern.permute.xlu0 0
    %405 = vperm.xlu0 %404, %v375
    %v406 = vpop.permute.xlu0 %405
    %409 = vset.pattern.permute.xlu0 0
    %410 = vperm.xlu0 %409, %v376
    %v411 = vpop.permute.xlu0 %410
    %414 = vset.pattern.permute.xlu0 0
    %415 = vperm.xlu0 %414, %v377
    %v416 = vpop.permute.xlu0 %415
    %v419 = vsel %vm55, %v362, 0
    %v422 = vsel %vm55, %v363, 0
    %v425 = vsel %vm55, %v364, 0
    %v428 = vsel %vm55, %v365, 0
    %v431 = vsel %vm55, %v366, 0
    %v434 = vsel %vm55, %v367, 0
    %v437 = vsel %vm55, %v368, 0
    %v440 = vsel %vm55, %v369, 0
    %442 = vmatprep.subr.mxu0 0.0
    %443 = vmatpush1.msra.mxu0 %v153
    %444 = vmatprep.subr.mxu0 0.0
    %445 = vmatpush1.msra.mxu0 %v154
    %446 = vmatprep.subr.mxu0 0.0
    %447 = vmatpush1.msra.mxu0 0.0
    %448 = vmatprep.subr.mxu0 0.0
    %449 = vmatpush1.msra.mxu0 0.0
    %450 = vmatprep.subr.mxu0 0.0
    %451 = vmatpush1.msra.mxu0 0.0
    %452 = vmatprep.subr.mxu0 0.0
    %453 = vmatpush1.msra.mxu0 0.0
    %454 = vmatprep.subr.mxu0 0.0
    %455 = vmatpush1.msra.mxu0 0.0
    %456 = vmatprep.subr.mxu0 0.0
    %457 = vmatpush1.msra.mxu0 0.0
    %458 = vmatprep.subr.mxu0 0.0
    %459 = vmatpush1.msra.mxu0 0.0
    %460 = vmatprep.subr.mxu0 0.0
    %461 = vmatpush1.msra.mxu0 0.0
    %462 = vmatprep.subr.mxu0 0.0
    %463 = vmatpush1.msra.mxu0 0.0
    %464 = vmatprep.subr.mxu0 0.0
    %465 = vmatpush1.msra.mxu0 0.0
    %466 = vmatprep.subr.mxu0 0.0
    %467 = vmatpush1.msra.mxu0 0.0
    %468 = vmatprep.subr.mxu0 0.0
    %469 = vmatpush1.msra.mxu0 0.0
    %470 = vmatprep.subr.mxu0 0.0
    %471 = vmatpush1.msra.mxu0 0.0
    %472 = vmatprep.subr.mxu0 0.0
    %473 = vmatpush1.msra.mxu0 0.0
    %474 = vmatprep.subr.mxu0 0.0
    %475 = vmatpush1.msra.mxu0 0.0
    %476 = vmatprep.subr.mxu0 0.0
    %477 = vmatpush1.msra.mxu0 0.0
    %478 = vmatprep.subr.mxu0 0.0
    %479 = vmatpush1.msra.mxu0 0.0
    %480 = vmatprep.subr.mxu0 0.0
    %481 = vmatpush1.msra.mxu0 0.0
    %482 = vmatprep.subr.mxu0 0.0
    %483 = vmatpush1.msra.mxu0 0.0
    %484 = vmatprep.subr.mxu0 0.0
    %485 = vmatpush1.msra.mxu0 0.0
    %486 = vmatprep.subr.mxu0 0.0
    %487 = vmatpush1.msra.mxu0 0.0
    %488 = vmatprep.subr.mxu0 0.0
    %489 = vmatpush1.msra.mxu0 0.0
    %490 = vmatprep.subr.mxu0 0.0
    %491 = vmatpush1.msra.mxu0 0.0
    %492 = vmatprep.subr.mxu0 0.0
    %493 = vmatpush1.msra.mxu0 0.0
    %494 = vmatprep.subr.mxu0 0.0
    %495 = vmatpush1.msra.mxu0 0.0
    %496 = vmatprep.subr.mxu0 0.0
    %497 = vmatpush1.msra.mxu0 0.0
    %498 = vmatprep.subr.mxu0 0.0
    %499 = vmatpush1.msra.mxu0 0.0
    %500 = vmatprep.subr.mxu0 0.0
    %501 = vmatpush1.msra.mxu0 0.0
    %502 = vmatprep.subr.mxu0 0.0
    %503 = vmatpush1.msra.mxu0 0.0
    %504 = vmatprep.subr.mxu0 0.0
    %505 = vmatpush1.msra.mxu0 0.0
    %506 = vmatprep.mubr.f32.mxu0 0.0
    %507 = vmatmul.mubr.f32.gmra.mrb[0].mxu0 %v419
    %v508 = vpop.f32.mrb[0].mxu0
    %v509 = vadd.f32 %v381, %v508
    %v510 = vpop.f32.mrb[0].mxu0
    %511 = vmatprep.mubr.f32.mxu0 0.0
    %512 = vmatmul.mubr.f32.gmra.mrb[0].mxu0 %v422
    %v513 = vpop.f32.mrb[0].mxu0
    %v514 = vadd.f32 %v386, %v513
    %v515 = vpop.f32.mrb[0].mxu0
    %516 = vmatprep.mubr.f32.mxu0 0.0
    %517 = vmatmul.mubr.f32.gmra.mrb[0].mxu0 %v425
    %v518 = vpop.f32.mrb[0].mxu0
    %v519 = vadd.f32 %v391, %v518
    %v520 = vpop.f32.mrb[0].mxu0
    %521 = vmatprep.mubr.f32.mxu0 0.0
    %522 = vmatmul.mubr.f32.gmra.mrb[0].mxu0 %v428
    %v523 = vpop.f32.mrb[0].mxu0
    %v524 = vadd.f32 %v396, %v523
    %v525 = vpop.f32.mrb[0].mxu0
    %526 = vmatprep.mubr.f32.mxu0 0.0
    %527 = vmatmul.mubr.f32.gmra.mrb[0].mxu0 %v431
    %v528 = vpop.f32.mrb[0].mxu0
    %v529 = vadd.f32 %v401, %v528
    %v530 = vpop.f32.mrb[0].mxu0
    %531 = vmatprep.mubr.f32.mxu0 0.0
    %532 = vmatmul.mubr.f32.gmra.mrb[0].mxu0 %v434
    %v533 = vpop.f32.mrb[0].mxu0
    %v534 = vadd.f32 %v406, %v533
    %v535 = vpop.f32.mrb[0].mxu0
    %536 = vmatprep.mubr.f32.mxu0 0.0
    %537 = vmatmul.mubr.f32.gmra.mrb[0].mxu0 %v437
    %v538 = vpop.f32.mrb[0].mxu0
    %v539 = vadd.f32 %v411, %v538
    %v540 = vpop.f32.mrb[0].mxu0
    %541 = vmatprep.mubr.f32.mxu0 0.0
    %542 = vmatmul.mubr.f32.gmra.mrb[0].mxu0 %v440
    %v543 = vpop.f32.mrb[0].mxu0
    %v544 = vadd.f32 %v416, %v543
    %v545 = vpop.f32.mrb[0].mxu0
    %546 = vdwg.mxu0
    %v547 = vlaneseq
    %v548 = vshrl.u32 %v547, 7
    %v549 = vsub.s32 1, %v548
    %v550 = vrot.slane %v155, %v549
    %v551 = vmul.f32 %v550, %v509
    %v552 = vmul.f32 %v550, %v514
    %v553 = vmul.f32 %v550, %v519
    %v554 = vmul.f32 %v550, %v524
    %v555 = vmul.f32 %v550, %v529
    %v556 = vmul.f32 %v550, %v534
    %v557 = vmul.f32 %v550, %v539
    %v558 = vmul.f32 %v550, %v544
    %v559 = vadd.f32 %v354, %v551
    %v560 = vadd.f32 %v355, %v552
    %v561 = vadd.f32 %v356, %v553
    %v562 = vadd.f32 %v357, %v554
    %v563 = vadd.f32 %v358, %v555
    %v564 = vadd.f32 %v359, %v556
    %v565 = vadd.f32 %v360, %v557
    %v566 = vadd.f32 %v361, %v558
    %v567 = vld [vmem:[%s5 + $0x80] sm:$0xff]
    %v568 = vld [vmem:[%s5 + $0x88] sm:$0xff]
    %v569 = vld [vmem:[%s5 + $0x90] sm:$0xff]
    %v570 = vld [vmem:[%s5 + $0x98] sm:$0xff]
    %v571 = vld [vmem:[%s5 + $0xa0] sm:$0xff]
    %v572 = vld [vmem:[%s5 + $0xa8] sm:$0xff]
    %v573 = vld [vmem:[%s5 + $0xb0] sm:$0xff]
    %v574 = vld [vmem:[%s5 + $0xb8] sm:$0xff]
    %v575 = vld [vmem:[%s6 + $0x80] sm:$0xff]
    %v576 = vld [vmem:[%s6 + $0x88] sm:$0xff]
    %v577 = vld [vmem:[%s6 + $0x90] sm:$0xff]
    %v578 = vld [vmem:[%s6 + $0x98] sm:$0xff]
    %v579 = vld [vmem:[%s6 + $0xa0] sm:$0xff]
    %v580 = vld [vmem:[%s6 + $0xa8] sm:$0xff]
    %v581 = vld [vmem:[%s6 + $0xb0] sm:$0xff]
    %v582 = vld [vmem:[%s6 + $0xb8] sm:$0xff]
    %584 = vset.pattern.permute.xlu0 0
    %585 = vperm.xlu0 %584, %v575
    %v586 = vpop.permute.xlu0 %585
    %589 = vset.pattern.permute.xlu0 0
    %590 = vperm.xlu0 %589, %v576
    %v591 = vpop.permute.xlu0 %590
    %594 = vset.pattern.permute.xlu0 0
    %595 = vperm.xlu0 %594, %v577
    %v596 = vpop.permute.xlu0 %595
    %599 = vset.pattern.permute.xlu0 0
    %600 = vperm.xlu0 %599, %v578
    %v601 = vpop.permute.xlu0 %600
    %604 = vset.pattern.permute.xlu0 0
    %605 = vperm.xlu0 %604, %v579
    %v606 = vpop.permute.xlu0 %605
    %609 = vset.pattern.permute.xlu0 0
    %610 = vperm.xlu0 %609, %v580
    %v611 = vpop.permute.xlu0 %610
    %614 = vset.pattern.permute.xlu0 0
    %615 = vperm.xlu0 %614, %v581
    %v616 = vpop.permute.xlu0 %615
    %619 = vset.pattern.permute.xlu0 0
    %620 = vperm.xlu0 %619, %v582
    %v621 = vpop.permute.xlu0 %620
    %v624 = vsel %vm55, %v567, 0
    %v627 = vsel %vm55, %v568, 0
    %v630 = vsel %vm55, %v569, 0
    %v633 = vsel %vm55, %v570, 0
    %v636 = vsel %vm55, %v571, 0
    %v639 = vsel %vm55, %v572, 0
    %v642 = vsel %vm55, %v573, 0
    %v645 = vsel %vm55, %v574, 0
    %647 = vmatprep.subr.mxu0 0.0
    %648 = vmatpush1.msra.mxu0 %v153
    %649 = vmatprep.subr.mxu0 0.0
    %650 = vmatpush1.msra.mxu0 %v154
    %651 = vmatprep.subr.mxu0 0.0
    %652 = vmatpush1.msra.mxu0 0.0
    %653 = vmatprep.subr.mxu0 0.0
    %654 = vmatpush1.msra.mxu0 0.0
    %655 = vmatprep.subr.mxu0 0.0
    %656 = vmatpush1.msra.mxu0 0.0
    %657 = vmatprep.subr.mxu0 0.0
    %658 = vmatpush1.msra.mxu0 0.0
    %659 = vmatprep.subr.mxu0 0.0
    %660 = vmatpush1.msra.mxu0 0.0
    %661 = vmatprep.subr.mxu0 0.0
    %662 = vmatpush1.msra.mxu0 0.0
    %663 = vmatprep.subr.mxu0 0.0
    %664 = vmatpush1.msra.mxu0 0.0
    %665 = vmatprep.subr.mxu0 0.0
    %666 = vmatpush1.msra.mxu0 0.0
    %667 = vmatprep.subr.mxu0 0.0
    %668 = vmatpush1.msra.mxu0 0.0
    %669 = vmatprep.subr.mxu0 0.0
    %670 = vmatpush1.msra.mxu0 0.0
    %671 = vmatprep.subr.mxu0 0.0
    %672 = vmatpush1.msra.mxu0 0.0
    %673 = vmatprep.subr.mxu0 0.0
    %674 = vmatpush1.msra.mxu0 0.0
    %675 = vmatprep.subr.mxu0 0.0
    %676 = vmatpush1.msra.mxu0 0.0
    %677 = vmatprep.subr.mxu0 0.0
    %678 = vmatpush1.msra.mxu0 0.0
    %679 = vmatprep.subr.mxu0 0.0
    %680 = vmatpush1.msra.mxu0 0.0
    %681 = vmatprep.subr.mxu0 0.0
    %682 = vmatpush1.msra.mxu0 0.0
    %683 = vmatprep.subr.mxu0 0.0
    %684 = vmatpush1.msra.mxu0 0.0
    %685 = vmatprep.subr.mxu0 0.0
    %686 = vmatpush1.msra.mxu0 0.0
    %687 = vmatprep.subr.mxu0 0.0
    %688 = vmatpush1.msra.mxu0 0.0
    %689 = vmatprep.subr.mxu0 0.0
    %690 = vmatpush1.msra.mxu0 0.0
    %691 = vmatprep.subr.mxu0 0.0
    %692 = vmatpush1.msra.mxu0 0.0
    %693 = vmatprep.subr.mxu0 0.0
    %694 = vmatpush1.msra.mxu0 0.0
    %695 = vmatprep.subr.mxu0 0.0
    %696 = vmatpush1.msra.mxu0 0.0
    %697 = vmatprep.subr.mxu0 0.0
    %698 = vmatpush1.msra.mxu0 0.0
    %699 = vmatprep.subr.mxu0 0.0
    %700 = vmatpush1.msra.mxu0 0.0
    %701 = vmatprep.subr.mxu0 0.0
    %702 = vmatpush1.msra.mxu0 0.0
    %703 = vmatprep.subr.mxu0 0.0
    %704 = vmatpush1.msra.mxu0 0.0
    %705 = vmatprep.subr.mxu0 0.0
    %706 = vmatpush1.msra.mxu0 0.0
    %707 = vmatprep.subr.mxu0 0.0
    %708 = vmatpush1.msra.mxu0 0.0
    %709 = vmatprep.subr.mxu0 0.0
    %710 = vmatpush1.msra.mxu0 0.0
    %711 = vmatprep.mubr.f32.mxu0 0.0
    %712 = vmatmul.mubr.f32.gmra.mrb[0].mxu0 %v624
    %v713 = vpop.f32.mrb[0].mxu0
    %v714 = vadd.f32 %v586, %v713
    %v715 = vpop.f32.mrb[0].mxu0
    %716 = vmatprep.mubr.f32.mxu0 0.0
    %717 = vmatmul.mubr.f32.gmra.mrb[0].mxu0 %v627
    %v718 = vpop.f32.mrb[0].mxu0
    %v719 = vadd.f32 %v591, %v718
    %v720 = vpop.f32.mrb[0].mxu0
    %721 = vmatprep.mubr.f32.mxu0 0.0
    %722 = vmatmul.mubr.f32.gmra.mrb[0].mxu0 %v630
    %v723 = vpop.f32.mrb[0].mxu0
    %v724 = vadd.f32 %v596, %v723
    %v725 = vpop.f32.mrb[0].mxu0
    %726 = vmatprep.mubr.f32.mxu0 0.0
    %727 = vmatmul.mubr.f32.gmra.mrb[0].mxu0 %v633
    %v728 = vpop.f32.mrb[0].mxu0
    %v729 = vadd.f32 %v601, %v728
    %v730 = vpop.f32.mrb[0].mxu0
    %731 = vmatprep.mubr.f32.mxu0 0.0
    %732 = vmatmul.mubr.f32.gmra.mrb[0].mxu0 %v636
    %v733 = vpop.f32.mrb[0].mxu0
    %v734 = vadd.f32 %v606, %v733
    %v735 = vpop.f32.mrb[0].mxu0
    %736 = vmatprep.mubr.f32.mxu0 0.0
    %737 = vmatmul.mubr.f32.gmra.mrb[0].mxu0 %v639
    %v738 = vpop.f32.mrb[0].mxu0
    %v739 = vadd.f32 %v611, %v738
    %v740 = vpop.f32.mrb[0].mxu0
    %741 = vmatprep.mubr.f32.mxu0 0.0
    %742 = vmatmul.mubr.f32.gmra.mrb[0].mxu0 %v642
    %v743 = vpop.f32.mrb[0].mxu0
    %v744 = vadd.f32 %v616, %v743
    %v745 = vpop.f32.mrb[0].mxu0
    %746 = vmatprep.mubr.f32.mxu0 0.0
    %747 = vmatmul.mubr.f32.gmra.mrb[0].mxu0 %v645
    %v748 = vpop.f32.mrb[0].mxu0
    %v749 = vadd.f32 %v621, %v748
    %v750 = vpop.f32.mrb[0].mxu0
    %751 = vdwg.mxu0
    %v752 = vlaneseq
    %v753 = vshrl.u32 %v752, 7
    %v754 = vsub.s32 2, %v753
    %v755 = vrot.slane %v155, %v754
    %v756 = vmul.f32 %v755, %v714
    %v757 = vmul.f32 %v755, %v719
    %v758 = vmul.f32 %v755, %v724
    %v759 = vmul.f32 %v755, %v729
    %v760 = vmul.f32 %v755, %v734
    %v761 = vmul.f32 %v755, %v739
    %v762 = vmul.f32 %v755, %v744
    %v763 = vmul.f32 %v755, %v749
    %v764 = vadd.f32 %v559, %v756
    %v765 = vadd.f32 %v560, %v757
    %v766 = vadd.f32 %v561, %v758
    %v767 = vadd.f32 %v562, %v759
    %v768 = vadd.f32 %v563, %v760
    %v769 = vadd.f32 %v564, %v761
    %v770 = vadd.f32 %v565, %v762
    %v771 = vadd.f32 %v566, %v763
    %v772 = vld [vmem:[%s5 + $0xc0] sm:$0xff]
    %v773 = vld [vmem:[%s5 + $0xc8] sm:$0xff]
    %v774 = vld [vmem:[%s5 + $0xd0] sm:$0xff]
    %v775 = vld [vmem:[%s5 + $0xd8] sm:$0xff]
    %v776 = vld [vmem:[%s5 + $0xe0] sm:$0xff]
    %v777 = vld [vmem:[%s5 + $0xe8] sm:$0xff]
    %v778 = vld [vmem:[%s5 + $0xf0] sm:$0xff]
    %v779 = vld [vmem:[%s5 + $0xf8] sm:$0xff]
    %v780 = vld [vmem:[%s6 + $0xc0] sm:$0xff]
    %v781 = vld [vmem:[%s6 + $0xc8] sm:$0xff]
    %v782 = vld [vmem:[%s6 + $0xd0] sm:$0xff]
    %v783 = vld [vmem:[%s6 + $0xd8] sm:$0xff]
    %v784 = vld [vmem:[%s6 + $0xe0] sm:$0xff]
    %v785 = vld [vmem:[%s6 + $0xe8] sm:$0xff]
    %v786 = vld [vmem:[%s6 + $0xf0] sm:$0xff]
    %v787 = vld [vmem:[%s6 + $0xf8] sm:$0xff]
    %789 = vset.pattern.permute.xlu0 0
    %790 = vperm.xlu0 %789, %v780
    %v791 = vpop.permute.xlu0 %790
    %794 = vset.pattern.permute.xlu0 0
    %795 = vperm.xlu0 %794, %v781
    %v796 = vpop.permute.xlu0 %795
    %799 = vset.pattern.permute.xlu0 0
    %800 = vperm.xlu0 %799, %v782
    %v801 = vpop.permute.xlu0 %800
    %804 = vset.pattern.permute.xlu0 0
    %805 = vperm.xlu0 %804, %v783
    %v806 = vpop.permute.xlu0 %805
    %809 = vset.pattern.permute.xlu0 0
    %810 = vperm.xlu0 %809, %v784
    %v811 = vpop.permute.xlu0 %810
    %814 = vset.pattern.permute.xlu0 0
    %815 = vperm.xlu0 %814, %v785
    %v816 = vpop.permute.xlu0 %815
    %819 = vset.pattern.permute.xlu0 0
    %820 = vperm.xlu0 %819, %v786
    %v821 = vpop.permute.xlu0 %820
    %824 = vset.pattern.permute.xlu0 0
    %825 = vperm.xlu0 %824, %v787
    %v826 = vpop.permute.xlu0 %825
    %v829 = vsel %vm55, %v772, 0
    %v832 = vsel %vm55, %v773, 0
    %v835 = vsel %vm55, %v774, 0
    %v838 = vsel %vm55, %v775, 0
    %v841 = vsel %vm55, %v776, 0
    %v844 = vsel %vm55, %v777, 0
    %v847 = vsel %vm55, %v778, 0
    %v850 = vsel %vm55, %v779, 0
    %852 = vmatprep.subr.mxu0 0.0
    %853 = vmatpush1.msra.mxu0 %v153
    %854 = vmatprep.subr.mxu0 0.0
    %855 = vmatpush1.msra.mxu0 %v154
    %856 = vmatprep.subr.mxu0 0.0
    %857 = vmatpush1.msra.mxu0 0.0
    %858 = vmatprep.subr.mxu0 0.0
    %859 = vmatpush1.msra.mxu0 0.0
    %860 = vmatprep.subr.mxu0 0.0
    %861 = vmatpush1.msra.mxu0 0.0
    %862 = vmatprep.subr.mxu0 0.0
    %863 = vmatpush1.msra.mxu0 0.0
    %864 = vmatprep.subr.mxu0 0.0
    %865 = vmatpush1.msra.mxu0 0.0
    %866 = vmatprep.subr.mxu0 0.0
    %867 = vmatpush1.msra.mxu0 0.0
    %868 = vmatprep.subr.mxu0 0.0
    %869 = vmatpush1.msra.mxu0 0.0
    %870 = vmatprep.subr.mxu0 0.0
    %871 = vmatpush1.msra.mxu0 0.0
    %872 = vmatprep.subr.mxu0 0.0
    %873 = vmatpush1.msra.mxu0 0.0
    %874 = vmatprep.subr.mxu0 0.0
    %875 = vmatpush1.msra.mxu0 0.0
    %876 = vmatprep.subr.mxu0 0.0
    %877 = vmatpush1.msra.mxu0 0.0
    %878 = vmatprep.subr.mxu0 0.0
    %879 = vmatpush1.msra.mxu0 0.0
    %880 = vmatprep.subr.mxu0 0.0
    %881 = vmatpush1.msra.mxu0 0.0
    %882 = vmatprep.subr.mxu0 0.0
    %883 = vmatpush1.msra.mxu0 0.0
    %884 = vmatprep.subr.mxu0 0.0
    %885 = vmatpush1.msra.mxu0 0.0
    %886 = vmatprep.subr.mxu0 0.0
    %887 = vmatpush1.msra.mxu0 0.0
    %888 = vmatprep.subr.mxu0 0.0
    %889 = vmatpush1.msra.mxu0 0.0
    %890 = vmatprep.subr.mxu0 0.0
    %891 = vmatpush1.msra.mxu0 0.0
    %892 = vmatprep.subr.mxu0 0.0
    %893 = vmatpush1.msra.mxu0 0.0
    %894 = vmatprep.subr.mxu0 0.0
    %895 = vmatpush1.msra.mxu0 0.0
    %896 = vmatprep.subr.mxu0 0.0
    %897 = vmatpush1.msra.mxu0 0.0
    %898 = vmatprep.subr.mxu0 0.0
    %899 = vmatpush1.msra.mxu0 0.0
    %900 = vmatprep.subr.mxu0 0.0
    %901 = vmatpush1.msra.mxu0 0.0
    %902 = vmatprep.subr.mxu0 0.0
    %903 = vmatpush1.msra.mxu0 0.0
    %904 = vmatprep.subr.mxu0 0.0
    %905 = vmatpush1.msra.mxu0 0.0
    %906 = vmatprep.subr.mxu0 0.0
    %907 = vmatpush1.msra.mxu0 0.0
    %908 = vmatprep.subr.mxu0 0.0
    %909 = vmatpush1.msra.mxu0 0.0
    %910 = vmatprep.subr.mxu0 0.0
    %911 = vmatpush1.msra.mxu0 0.0
    %912 = vmatprep.subr.mxu0 0.0
    %913 = vmatpush1.msra.mxu0 0.0
    %914 = vmatprep.subr.mxu0 0.0
    %915 = vmatpush1.msra.mxu0 0.0
    %916 = vmatprep.mubr.f32.mxu0 0.0
    %917 = vmatmul.mubr.f32.gmra.mrb[0].mxu0 %v829
    %v918 = vpop.f32.mrb[0].mxu0
    %v919 = vadd.f32 %v791, %v918
    %v920 = vpop.f32.mrb[0].mxu0
    %921 = vmatprep.mubr.f32.mxu0 0.0
    %922 = vmatmul.mubr.f32.gmra.mrb[0].mxu0 %v832
    %v923 = vpop.f32.mrb[0].mxu0
    %v924 = vadd.f32 %v796, %v923
    %v925 = vpop.f32.mrb[0].mxu0
    %926 = vmatprep.mubr.f32.mxu0 0.0
    %927 = vmatmul.mubr.f32.gmra.mrb[0].mxu0 %v835
    %v928 = vpop.f32.mrb[0].mxu0
    %v929 = vadd.f32 %v801, %v928
    %v930 = vpop.f32.mrb[0].mxu0
    %931 = vmatprep.mubr.f32.mxu0 0.0
    %932 = vmatmul.mubr.f32.gmra.mrb[0].mxu0 %v838
    %v933 = vpop.f32.mrb[0].mxu0
    %v934 = vadd.f32 %v806, %v933
    %v935 = vpop.f32.mrb[0].mxu0
    %936 = vmatprep.mubr.f32.mxu0 0.0
    %937 = vmatmul.mubr.f32.gmra.mrb[0].mxu0 %v841
    %v938 = vpop.f32.mrb[0].mxu0
    %v939 = vadd.f32 %v811, %v938
    %v940 = vpop.f32.mrb[0].mxu0
    %941 = vmatprep.mubr.f32.mxu0 0.0
    %942 = vmatmul.mubr.f32.gmra.mrb[0].mxu0 %v844
    %v943 = vpop.f32.mrb[0].mxu0
    %v944 = vadd.f32 %v816, %v943
    %v945 = vpop.f32.mrb[0].mxu0
    %946 = vmatprep.mubr.f32.mxu0 0.0
    %947 = vmatmul.mubr.f32.gmra.mrb[0].mxu0 %v847
    %v948 = vpop.f32.mrb[0].mxu0
    %v949 = vadd.f32 %v821, %v948
    %v950 = vpop.f32.mrb[0].mxu0
    %951 = vmatprep.mubr.f32.mxu0 0.0
    %952 = vmatmul.mubr.f32.gmra.mrb[0].mxu0 %v850
    %v953 = vpop.f32.mrb[0].mxu0
    %v954 = vadd.f32 %v826, %v953
    %v955 = vpop.f32.mrb[0].mxu0
    %956 = vdwg.mxu0
    %v957 = vlaneseq
    %v958 = vshrl.u32 %v957, 7
    %v959 = vsub.s32 3, %v958
    %v960 = vrot.slane %v155, %v959
    %v961 = vmul.f32 %v960, %v919
    %v962 = vmul.f32 %v960, %v924
    %v963 = vmul.f32 %v960, %v929
    %v964 = vmul.f32 %v960, %v934
    %v965 = vmul.f32 %v960, %v939
    %v966 = vmul.f32 %v960, %v944
    %v967 = vmul.f32 %v960, %v949
    %v968 = vmul.f32 %v960, %v954
    %v969 = vadd.f32 %v764, %v961
    %v970 = vadd.f32 %v765, %v962
    %v971 = vadd.f32 %v766, %v963
    %v972 = vadd.f32 %v767, %v964
    %v973 = vadd.f32 %v768, %v965
    %v974 = vadd.f32 %v769, %v966
    %v975 = vadd.f32 %v770, %v967
    %v976 = vadd.f32 %v771, %v968
    %v977 = vld [vmem:[%s5 + $0x100] sm:$0xff]
    %v978 = vld [vmem:[%s5 + $0x108] sm:$0xff]
    %v979 = vld [vmem:[%s5 + $0x110] sm:$0xff]
    %v980 = vld [vmem:[%s5 + $0x118] sm:$0xff]
    %v981 = vld [vmem:[%s5 + $0x120] sm:$0xff]
    %v982 = vld [vmem:[%s5 + $0x128] sm:$0xff]
    %v983 = vld [vmem:[%s5 + $0x130] sm:$0xff]
    %v984 = vld [vmem:[%s5 + $0x138] sm:$0xff]
    %v985 = vld [vmem:[%s6 + $0x100] sm:$0xff]
    %v986 = vld [vmem:[%s6 + $0x108] sm:$0xff]
    %v987 = vld [vmem:[%s6 + $0x110] sm:$0xff]
    %v988 = vld [vmem:[%s6 + $0x118] sm:$0xff]
    %v989 = vld [vmem:[%s6 + $0x120] sm:$0xff]
    %v990 = vld [vmem:[%s6 + $0x128] sm:$0xff]
    %v991 = vld [vmem:[%s6 + $0x130] sm:$0xff]
    %v992 = vld [vmem:[%s6 + $0x138] sm:$0xff]
    %994 = vset.pattern.permute.xlu0 0
    %995 = vperm.xlu0 %994, %v985
    %v996 = vpop.permute.xlu0 %995
    %999 = vset.pattern.permute.xlu0 0
    %1000 = vperm.xlu0 %999, %v986
    %v1001 = vpop.permute.xlu0 %1000
    %1004 = vset.pattern.permute.xlu0 0
    %1005 = vperm.xlu0 %1004, %v987
    %v1006 = vpop.permute.xlu0 %1005
    %1009 = vset.pattern.permute.xlu0 0
    %1010 = vperm.xlu0 %1009, %v988
    %v1011 = vpop.permute.xlu0 %1010
    %1014 = vset.pattern.permute.xlu0 0
    %1015 = vperm.xlu0 %1014, %v989
    %v1016 = vpop.permute.xlu0 %1015
    %1019 = vset.pattern.permute.xlu0 0
    %1020 = vperm.xlu0 %1019, %v990
    %v1021 = vpop.permute.xlu0 %1020
    %1024 = vset.pattern.permute.xlu0 0
    %1025 = vperm.xlu0 %1024, %v991
    %v1026 = vpop.permute.xlu0 %1025
    %1029 = vset.pattern.permute.xlu0 0
    %1030 = vperm.xlu0 %1029, %v992
    %v1031 = vpop.permute.xlu0 %1030
    %v1034 = vsel %vm55, %v977, 0
    %v1037 = vsel %vm55, %v978, 0
    %v1040 = vsel %vm55, %v979, 0
    %v1043 = vsel %vm55, %v980, 0
    %v1046 = vsel %vm55, %v981, 0
    %v1049 = vsel %vm55, %v982, 0
    %v1052 = vsel %vm55, %v983, 0
    %v1055 = vsel %vm55, %v984, 0
    %1057 = vmatprep.subr.mxu0 0.0
    %1058 = vmatpush1.msra.mxu0 %v153
    %1059 = vmatprep.subr.mxu0 0.0
    %1060 = vmatpush1.msra.mxu0 %v154
    %1061 = vmatprep.subr.mxu0 0.0
    %1062 = vmatpush1.msra.mxu0 0.0
    %1063 = vmatprep.subr.mxu0 0.0
    %1064 = vmatpush1.msra.mxu0 0.0
    %1065 = vmatprep.subr.mxu0 0.0
    %1066 = vmatpush1.msra.mxu0 0.0
    %1067 = vmatprep.subr.mxu0 0.0
    %1068 = vmatpush1.msra.mxu0 0.0
    %1069 = vmatprep.subr.mxu0 0.0
    %1070 = vmatpush1.msra.mxu0 0.0
    %1071 = vmatprep.subr.mxu0 0.0
    %1072 = vmatpush1.msra.mxu0 0.0
    %1073 = vmatprep.subr.mxu0 0.0
    %1074 = vmatpush1.msra.mxu0 0.0
    %1075 = vmatprep.subr.mxu0 0.0
    %1076 = vmatpush1.msra.mxu0 0.0
    %1077 = vmatprep.subr.mxu0 0.0
    %1078 = vmatpush1.msra.mxu0 0.0
    %1079 = vmatprep.subr.mxu0 0.0
    %1080 = vmatpush1.msra.mxu0 0.0
    %1081 = vmatprep.subr.mxu0 0.0
    %1082 = vmatpush1.msra.mxu0 0.0
    %1083 = vmatprep.subr.mxu0 0.0
    %1084 = vmatpush1.msra.mxu0 0.0
    %1085 = vmatprep.subr.mxu0 0.0
    %1086 = vmatpush1.msra.mxu0 0.0
    %1087 = vmatprep.subr.mxu0 0.0
    %1088 = vmatpush1.msra.mxu0 0.0
    %1089 = vmatprep.subr.mxu0 0.0
    %1090 = vmatpush1.msra.mxu0 0.0
    %1091 = vmatprep.subr.mxu0 0.0
    %1092 = vmatpush1.msra.mxu0 0.0
    %1093 = vmatprep.subr.mxu0 0.0
    %1094 = vmatpush1.msra.mxu0 0.0
    %1095 = vmatprep.subr.mxu0 0.0
    %1096 = vmatpush1.msra.mxu0 0.0
    %1097 = vmatprep.subr.mxu0 0.0
    %1098 = vmatpush1.msra.mxu0 0.0
    %1099 = vmatprep.subr.mxu0 0.0
    %1100 = vmatpush1.msra.mxu0 0.0
    %1101 = vmatprep.subr.mxu0 0.0
    %1102 = vmatpush1.msra.mxu0 0.0
    %1103 = vmatprep.subr.mxu0 0.0
    %1104 = vmatpush1.msra.mxu0 0.0
    %1105 = vmatprep.subr.mxu0 0.0
    %1106 = vmatpush1.msra.mxu0 0.0
    %1107 = vmatprep.subr.mxu0 0.0
    %1108 = vmatpush1.msra.mxu0 0.0
    %1109 = vmatprep.subr.mxu0 0.0
    %1110 = vmatpush1.msra.mxu0 0.0
    %1111 = vmatprep.subr.mxu0 0.0
    %1112 = vmatpush1.msra.mxu0 0.0
    %1113 = vmatprep.subr.mxu0 0.0
    %1114 = vmatpush1.msra.mxu0 0.0
    %1115 = vmatprep.subr.mxu0 0.0
    %1116 = vmatpush1.msra.mxu0 0.0
    %1117 = vmatprep.subr.mxu0 0.0
    %1118 = vmatpush1.msra.mxu0 0.0
    %1119 = vmatprep.subr.mxu0 0.0
    %1120 = vmatpush1.msra.mxu0 0.0
    %1121 = vmatprep.mubr.f32.mxu0 0.0
    %1122 = vmatmul.mubr.f32.gmra.mrb[0].mxu0 %v1034
    %v1123 = vpop.f32.mrb[0].mxu0
    %v1124 = vadd.f32 %v996, %v1123
    %v1125 = vpop.f32.mrb[0].mxu0
    %1126 = vmatprep.mubr.f32.mxu0 0.0
    %1127 = vmatmul.mubr.f32.gmra.mrb[0].mxu0 %v1037
    %v1128 = vpop.f32.mrb[0].mxu0
    %v1129 = vadd.f32 %v1001, %v1128
    %v1130 = vpop.f32.mrb[0].mxu0
    %1131 = vmatprep.mubr.f32.mxu0 0.0
    %1132 = vmatmul.mubr.f32.gmra.mrb[0].mxu0 %v1040
    %v1133 = vpop.f32.mrb[0].mxu0
    %v1134 = vadd.f32 %v1006, %v1133
    %v1135 = vpop.f32.mrb[0].mxu0
    %1136 = vmatprep.mubr.f32.mxu0 0.0
    %1137 = vmatmul.mubr.f32.gmra.mrb[0].mxu0 %v1043
    %v1138 = vpop.f32.mrb[0].mxu0
    %v1139 = vadd.f32 %v1011, %v1138
    %v1140 = vpop.f32.mrb[0].mxu0
    %1141 = vmatprep.mubr.f32.mxu0 0.0
    %1142 = vmatmul.mubr.f32.gmra.mrb[0].mxu0 %v1046
    %v1143 = vpop.f32.mrb[0].mxu0
    %v1144 = vadd.f32 %v1016, %v1143
    %v1145 = vpop.f32.mrb[0].mxu0
    %1146 = vmatprep.mubr.f32.mxu0 0.0
    %1147 = vmatmul.mubr.f32.gmra.mrb[0].mxu0 %v1049
    %v1148 = vpop.f32.mrb[0].mxu0
    %v1149 = vadd.f32 %v1021, %v1148
    %v1150 = vpop.f32.mrb[0].mxu0
    %1151 = vmatprep.mubr.f32.mxu0 0.0
    %1152 = vmatmul.mubr.f32.gmra.mrb[0].mxu0 %v1052
    %v1153 = vpop.f32.mrb[0].mxu0
    %v1154 = vadd.f32 %v1026, %v1153
    %v1155 = vpop.f32.mrb[0].mxu0
    %1156 = vmatprep.mubr.f32.mxu0 0.0
    %1157 = vmatmul.mubr.f32.gmra.mrb[0].mxu0 %v1055
    %v1158 = vpop.f32.mrb[0].mxu0
    %v1159 = vadd.f32 %v1031, %v1158
    %v1160 = vpop.f32.mrb[0].mxu0
    %1161 = vdwg.mxu0
    %v1162 = vlaneseq
    %v1163 = vshrl.u32 %v1162, 7
    %v1164 = vsub.s32 4, %v1163
    %v1165 = vrot.slane %v155, %v1164
    %v1166 = vmul.f32 %v1165, %v1124
    %v1167 = vmul.f32 %v1165, %v1129
    %v1168 = vmul.f32 %v1165, %v1134
    %v1169 = vmul.f32 %v1165, %v1139
    %v1170 = vmul.f32 %v1165, %v1144
    %v1171 = vmul.f32 %v1165, %v1149
    %v1172 = vmul.f32 %v1165, %v1154
    %v1173 = vmul.f32 %v1165, %v1159
    %v1174 = vadd.f32 %v969, %v1166
    %v1175 = vadd.f32 %v970, %v1167
    %v1176 = vadd.f32 %v971, %v1168
    %v1177 = vadd.f32 %v972, %v1169
    %v1178 = vadd.f32 %v973, %v1170
    %v1179 = vadd.f32 %v974, %v1171
    %v1180 = vadd.f32 %v975, %v1172
    %v1181 = vadd.f32 %v976, %v1173
    %v1182 = vld [vmem:[%s5 + $0x140] sm:$0xff]
    %v1183 = vld [vmem:[%s5 + $0x148] sm:$0xff]
    %v1184 = vld [vmem:[%s5 + $0x150] sm:$0xff]
    %v1185 = vld [vmem:[%s5 + $0x158] sm:$0xff]
    %v1186 = vld [vmem:[%s5 + $0x160] sm:$0xff]
    %v1187 = vld [vmem:[%s5 + $0x168] sm:$0xff]
    %v1188 = vld [vmem:[%s5 + $0x170] sm:$0xff]
    %v1189 = vld [vmem:[%s5 + $0x178] sm:$0xff]
    %v1190 = vld [vmem:[%s6 + $0x140] sm:$0xff]
    %v1191 = vld [vmem:[%s6 + $0x148] sm:$0xff]
    %v1192 = vld [vmem:[%s6 + $0x150] sm:$0xff]
    %v1193 = vld [vmem:[%s6 + $0x158] sm:$0xff]
    %v1194 = vld [vmem:[%s6 + $0x160] sm:$0xff]
    %v1195 = vld [vmem:[%s6 + $0x168] sm:$0xff]
    %v1196 = vld [vmem:[%s6 + $0x170] sm:$0xff]
    %v1197 = vld [vmem:[%s6 + $0x178] sm:$0xff]
    %1199 = vset.pattern.permute.xlu0 0
    %1200 = vperm.xlu0 %1199, %v1190
    %v1201 = vpop.permute.xlu0 %1200
    %1204 = vset.pattern.permute.xlu0 0
    %1205 = vperm.xlu0 %1204, %v1191
    %v1206 = vpop.permute.xlu0 %1205
    %1209 = vset.pattern.permute.xlu0 0
    %1210 = vperm.xlu0 %1209, %v1192
    %v1211 = vpop.permute.xlu0 %1210
    %1214 = vset.pattern.permute.xlu0 0
    %1215 = vperm.xlu0 %1214, %v1193
    %v1216 = vpop.permute.xlu0 %1215
    %1219 = vset.pattern.permute.xlu0 0
    %1220 = vperm.xlu0 %1219, %v1194
    %v1221 = vpop.permute.xlu0 %1220
    %1224 = vset.pattern.permute.xlu0 0
    %1225 = vperm.xlu0 %1224, %v1195
    %v1226 = vpop.permute.xlu0 %1225
    %1229 = vset.pattern.permute.xlu0 0
    %1230 = vperm.xlu0 %1229, %v1196
    %v1231 = vpop.permute.xlu0 %1230
    %1234 = vset.pattern.permute.xlu0 0
    %1235 = vperm.xlu0 %1234, %v1197
    %v1236 = vpop.permute.xlu0 %1235
    %v1239 = vsel %vm55, %v1182, 0
    %v1242 = vsel %vm55, %v1183, 0
    %v1245 = vsel %vm55, %v1184, 0
    %v1248 = vsel %vm55, %v1185, 0
    %v1251 = vsel %vm55, %v1186, 0
    %v1254 = vsel %vm55, %v1187, 0
    %v1257 = vsel %vm55, %v1188, 0
    %v1260 = vsel %vm55, %v1189, 0
    %1262 = vmatprep.subr.mxu0 0.0
    %1263 = vmatpush1.msra.mxu0 %v153
    %1264 = vmatprep.subr.mxu0 0.0
    %1265 = vmatpush1.msra.mxu0 %v154
    %1266 = vmatprep.subr.mxu0 0.0
    %1267 = vmatpush1.msra.mxu0 0.0
    %1268 = vmatprep.subr.mxu0 0.0
    %1269 = vmatpush1.msra.mxu0 0.0
    %1270 = vmatprep.subr.mxu0 0.0
    %1271 = vmatpush1.msra.mxu0 0.0
    %1272 = vmatprep.subr.mxu0 0.0
    %1273 = vmatpush1.msra.mxu0 0.0
    %1274 = vmatprep.subr.mxu0 0.0
    %1275 = vmatpush1.msra.mxu0 0.0
    %1276 = vmatprep.subr.mxu0 0.0
    %1277 = vmatpush1.msra.mxu0 0.0
    %1278 = vmatprep.subr.mxu0 0.0
    %1279 = vmatpush1.msra.mxu0 0.0
    %1280 = vmatprep.subr.mxu0 0.0
    %1281 = vmatpush1.msra.mxu0 0.0
    %1282 = vmatprep.subr.mxu0 0.0
    %1283 = vmatpush1.msra.mxu0 0.0
    %1284 = vmatprep.subr.mxu0 0.0
    %1285 = vmatpush1.msra.mxu0 0.0
    %1286 = vmatprep.subr.mxu0 0.0
    %1287 = vmatpush1.msra.mxu0 0.0
    %1288 = vmatprep.subr.mxu0 0.0
    %1289 = vmatpush1.msra.mxu0 0.0
    %1290 = vmatprep.subr.mxu0 0.0
    %1291 = vmatpush1.msra.mxu0 0.0
    %1292 = vmatprep.subr.mxu0 0.0
    %1293 = vmatpush1.msra.mxu0 0.0
    %1294 = vmatprep.subr.mxu0 0.0
    %1295 = vmatpush1.msra.mxu0 0.0
    %1296 = vmatprep.subr.mxu0 0.0
    %1297 = vmatpush1.msra.mxu0 0.0
    %1298 = vmatprep.subr.mxu0 0.0
    %1299 = vmatpush1.msra.mxu0 0.0
    %1300 = vmatprep.subr.mxu0 0.0
    %1301 = vmatpush1.msra.mxu0 0.0
    %1302 = vmatprep.subr.mxu0 0.0
    %1303 = vmatpush1.msra.mxu0 0.0
    %1304 = vmatprep.subr.mxu0 0.0
    %1305 = vmatpush1.msra.mxu0 0.0
    %1306 = vmatprep.subr.mxu0 0.0
    %1307 = vmatpush1.msra.mxu0 0.0
    %1308 = vmatprep.subr.mxu0 0.0
    %1309 = vmatpush1.msra.mxu0 0.0
    %1310 = vmatprep.subr.mxu0 0.0
    %1311 = vmatpush1.msra.mxu0 0.0
    %1312 = vmatprep.subr.mxu0 0.0
    %1313 = vmatpush1.msra.mxu0 0.0
    %1314 = vmatprep.subr.mxu0 0.0
    %1315 = vmatpush1.msra.mxu0 0.0
    %1316 = vmatprep.subr.mxu0 0.0
    %1317 = vmatpush1.msra.mxu0 0.0
    %1318 = vmatprep.subr.mxu0 0.0
    %1319 = vmatpush1.msra.mxu0 0.0
    %1320 = vmatprep.subr.mxu0 0.0
    %1321 = vmatpush1.msra.mxu0 0.0
    %1322 = vmatprep.subr.mxu0 0.0
    %1323 = vmatpush1.msra.mxu0 0.0
    %1324 = vmatprep.subr.mxu0 0.0
    %1325 = vmatpush1.msra.mxu0 0.0
    %1326 = vmatprep.mubr.f32.mxu0 0.0
    %1327 = vmatmul.mubr.f32.gmra.mrb[0].mxu0 %v1239
    %v1328 = vpop.f32.mrb[0].mxu0
    %v1329 = vadd.f32 %v1201, %v1328
    %v1330 = vpop.f32.mrb[0].mxu0
    %1331 = vmatprep.mubr.f32.mxu0 0.0
    %1332 = vmatmul.mubr.f32.gmra.mrb[0].mxu0 %v1242
    %v1333 = vpop.f32.mrb[0].mxu0
    %v1334 = vadd.f32 %v1206, %v1333
    %v1335 = vpop.f32.mrb[0].mxu0
    %1336 = vmatprep.mubr.f32.mxu0 0.0
    %1337 = vmatmul.mubr.f32.gmra.mrb[0].mxu0 %v1245
    %v1338 = vpop.f32.mrb[0].mxu0
    %v1339 = vadd.f32 %v1211, %v1338
    %v1340 = vpop.f32.mrb[0].mxu0
    %1341 = vmatprep.mubr.f32.mxu0 0.0
    %1342 = vmatmul.mubr.f32.gmra.mrb[0].mxu0 %v1248
    %v1343 = vpop.f32.mrb[0].mxu0
    %v1344 = vadd.f32 %v1216, %v1343
    %v1345 = vpop.f32.mrb[0].mxu0
    %1346 = vmatprep.mubr.f32.mxu0 0.0
    %1347 = vmatmul.mubr.f32.gmra.mrb[0].mxu0 %v1251
    %v1348 = vpop.f32.mrb[0].mxu0
    %v1349 = vadd.f32 %v1221, %v1348
    %v1350 = vpop.f32.mrb[0].mxu0
    %1351 = vmatprep.mubr.f32.mxu0 0.0
    %1352 = vmatmul.mubr.f32.gmra.mrb[0].mxu0 %v1254
    %v1353 = vpop.f32.mrb[0].mxu0
    %v1354 = vadd.f32 %v1226, %v1353
    %v1355 = vpop.f32.mrb[0].mxu0
    %1356 = vmatprep.mubr.f32.mxu0 0.0
    %1357 = vmatmul.mubr.f32.gmra.mrb[0].mxu0 %v1257
    %v1358 = vpop.f32.mrb[0].mxu0
    %v1359 = vadd.f32 %v1231, %v1358
    %v1360 = vpop.f32.mrb[0].mxu0
    %1361 = vmatprep.mubr.f32.mxu0 0.0
    %1362 = vmatmul.mubr.f32.gmra.mrb[0].mxu0 %v1260
    %v1363 = vpop.f32.mrb[0].mxu0
    %v1364 = vadd.f32 %v1236, %v1363
    %v1365 = vpop.f32.mrb[0].mxu0
    %1366 = vdwg.mxu0
    %v1367 = vlaneseq
    %v1368 = vshrl.u32 %v1367, 7
    %v1369 = vsub.s32 5, %v1368
    %v1370 = vrot.slane %v155, %v1369
    %v1371 = vmul.f32 %v1370, %v1329
    %v1372 = vmul.f32 %v1370, %v1334
    %v1373 = vmul.f32 %v1370, %v1339
    %v1374 = vmul.f32 %v1370, %v1344
    %v1375 = vmul.f32 %v1370, %v1349
    %v1376 = vmul.f32 %v1370, %v1354
    %v1377 = vmul.f32 %v1370, %v1359
    %v1378 = vmul.f32 %v1370, %v1364
    %v1379 = vadd.f32 %v1174, %v1371
    %v1380 = vadd.f32 %v1175, %v1372
    %v1381 = vadd.f32 %v1176, %v1373
    %v1382 = vadd.f32 %v1177, %v1374
    %v1383 = vadd.f32 %v1178, %v1375
    %v1384 = vadd.f32 %v1179, %v1376
    %v1385 = vadd.f32 %v1180, %v1377
    %v1386 = vadd.f32 %v1181, %v1378
    %v1387 = vld [vmem:[%s5 + $0x180] sm:$0xff]
    %v1388 = vld [vmem:[%s5 + $0x188] sm:$0xff]
    %v1389 = vld [vmem:[%s5 + $0x190] sm:$0xff]
    %v1390 = vld [vmem:[%s5 + $0x198] sm:$0xff]
    %v1391 = vld [vmem:[%s5 + $0x1a0] sm:$0xff]
    %v1392 = vld [vmem:[%s5 + $0x1a8] sm:$0xff]
    %v1393 = vld [vmem:[%s5 + $0x1b0] sm:$0xff]
    %v1394 = vld [vmem:[%s5 + $0x1b8] sm:$0xff]
    %v1395 = vld [vmem:[%s6 + $0x180] sm:$0xff]
    %v1396 = vld [vmem:[%s6 + $0x188] sm:$0xff]
    %v1397 = vld [vmem:[%s6 + $0x190] sm:$0xff]
    %v1398 = vld [vmem:[%s6 + $0x198] sm:$0xff]
    %v1399 = vld [vmem:[%s6 + $0x1a0] sm:$0xff]
    %v1400 = vld [vmem:[%s6 + $0x1a8] sm:$0xff]
    %v1401 = vld [vmem:[%s6 + $0x1b0] sm:$0xff]
    %v1402 = vld [vmem:[%s6 + $0x1b8] sm:$0xff]
    %1404 = vset.pattern.permute.xlu0 0
    %1405 = vperm.xlu0 %1404, %v1395
    %v1406 = vpop.permute.xlu0 %1405
    %1409 = vset.pattern.permute.xlu0 0
    %1410 = vperm.xlu0 %1409, %v1396
    %v1411 = vpop.permute.xlu0 %1410
    %1414 = vset.pattern.permute.xlu0 0
    %1415 = vperm.xlu0 %1414, %v1397
    %v1416 = vpop.permute.xlu0 %1415
    %1419 = vset.pattern.permute.xlu0 0
    %1420 = vperm.xlu0 %1419, %v1398
    %v1421 = vpop.permute.xlu0 %1420
    %1424 = vset.pattern.permute.xlu0 0
    %1425 = vperm.xlu0 %1424, %v1399
    %v1426 = vpop.permute.xlu0 %1425
    %1429 = vset.pattern.permute.xlu0 0
    %1430 = vperm.xlu0 %1429, %v1400
    %v1431 = vpop.permute.xlu0 %1430
    %1434 = vset.pattern.permute.xlu0 0
    %1435 = vperm.xlu0 %1434, %v1401
    %v1436 = vpop.permute.xlu0 %1435
    %1439 = vset.pattern.permute.xlu0 0
    %1440 = vperm.xlu0 %1439, %v1402
    %v1441 = vpop.permute.xlu0 %1440
    %v1444 = vsel %vm55, %v1387, 0
    %v1447 = vsel %vm55, %v1388, 0
    %v1450 = vsel %vm55, %v1389, 0
    %v1453 = vsel %vm55, %v1390, 0
    %v1456 = vsel %vm55, %v1391, 0
    %v1459 = vsel %vm55, %v1392, 0
    %v1462 = vsel %vm55, %v1393, 0
    %v1465 = vsel %vm55, %v1394, 0
    %1467 = vmatprep.subr.mxu0 0.0
    %1468 = vmatpush1.msra.mxu0 %v153
    %1469 = vmatprep.subr.mxu0 0.0
    %1470 = vmatpush1.msra.mxu0 %v154
    %1471 = vmatprep.subr.mxu0 0.0
    %1472 = vmatpush1.msra.mxu0 0.0
    %1473 = vmatprep.subr.mxu0 0.0
    %1474 = vmatpush1.msra.mxu0 0.0
    %1475 = vmatprep.subr.mxu0 0.0
    %1476 = vmatpush1.msra.mxu0 0.0
    %1477 = vmatprep.subr.mxu0 0.0
    %1478 = vmatpush1.msra.mxu0 0.0
    %1479 = vmatprep.subr.mxu0 0.0
    %1480 = vmatpush1.msra.mxu0 0.0
    %1481 = vmatprep.subr.mxu0 0.0
    %1482 = vmatpush1.msra.mxu0 0.0
    %1483 = vmatprep.subr.mxu0 0.0
    %1484 = vmatpush1.msra.mxu0 0.0
    %1485 = vmatprep.subr.mxu0 0.0
    %1486 = vmatpush1.msra.mxu0 0.0
    %1487 = vmatprep.subr.mxu0 0.0
    %1488 = vmatpush1.msra.mxu0 0.0
    %1489 = vmatprep.subr.mxu0 0.0
    %1490 = vmatpush1.msra.mxu0 0.0
    %1491 = vmatprep.subr.mxu0 0.0
    %1492 = vmatpush1.msra.mxu0 0.0
    %1493 = vmatprep.subr.mxu0 0.0
    %1494 = vmatpush1.msra.mxu0 0.0
    %1495 = vmatprep.subr.mxu0 0.0
    %1496 = vmatpush1.msra.mxu0 0.0
    %1497 = vmatprep.subr.mxu0 0.0
    %1498 = vmatpush1.msra.mxu0 0.0
    %1499 = vmatprep.subr.mxu0 0.0
    %1500 = vmatpush1.msra.mxu0 0.0
    %1501 = vmatprep.subr.mxu0 0.0
    %1502 = vmatpush1.msra.mxu0 0.0
    %1503 = vmatprep.subr.mxu0 0.0
    %1504 = vmatpush1.msra.mxu0 0.0
    %1505 = vmatprep.subr.mxu0 0.0
    %1506 = vmatpush1.msra.mxu0 0.0
    %1507 = vmatprep.subr.mxu0 0.0
    %1508 = vmatpush1.msra.mxu0 0.0
    %1509 = vmatprep.subr.mxu0 0.0
    %1510 = vmatpush1.msra.mxu0 0.0
    %1511 = vmatprep.subr.mxu0 0.0
    %1512 = vmatpush1.msra.mxu0 0.0
    %1513 = vmatprep.subr.mxu0 0.0
    %1514 = vmatpush1.msra.mxu0 0.0
    %1515 = vmatprep.subr.mxu0 0.0
    %1516 = vmatpush1.msra.mxu0 0.0
    %1517 = vmatprep.subr.mxu0 0.0
    %1518 = vmatpush1.msra.mxu0 0.0
    %1519 = vmatprep.subr.mxu0 0.0
    %1520 = vmatpush1.msra.mxu0 0.0
    %1521 = vmatprep.subr.mxu0 0.0
    %1522 = vmatpush1.msra.mxu0 0.0
    %1523 = vmatprep.subr.mxu0 0.0
    %1524 = vmatpush1.msra.mxu0 0.0
    %1525 = vmatprep.subr.mxu0 0.0
    %1526 = vmatpush1.msra.mxu0 0.0
    %1527 = vmatprep.subr.mxu0 0.0
    %1528 = vmatpush1.msra.mxu0 0.0
    %1529 = vmatprep.subr.mxu0 0.0
    %1530 = vmatpush1.msra.mxu0 0.0
    %1531 = vmatprep.mubr.f32.mxu0 0.0
    %1532 = vmatmul.mubr.f32.gmra.mrb[0].mxu0 %v1444
    %v1533 = vpop.f32.mrb[0].mxu0
    %v1534 = vadd.f32 %v1406, %v1533
    %v1535 = vpop.f32.mrb[0].mxu0
    %1536 = vmatprep.mubr.f32.mxu0 0.0
    %1537 = vmatmul.mubr.f32.gmra.mrb[0].mxu0 %v1447
    %v1538 = vpop.f32.mrb[0].mxu0
    %v1539 = vadd.f32 %v1411, %v1538
    %v1540 = vpop.f32.mrb[0].mxu0
    %1541 = vmatprep.mubr.f32.mxu0 0.0
    %1542 = vmatmul.mubr.f32.gmra.mrb[0].mxu0 %v1450
    %v1543 = vpop.f32.mrb[0].mxu0
    %v1544 = vadd.f32 %v1416, %v1543
    %v1545 = vpop.f32.mrb[0].mxu0
    %1546 = vmatprep.mubr.f32.mxu0 0.0
    %1547 = vmatmul.mubr.f32.gmra.mrb[0].mxu0 %v1453
    %v1548 = vpop.f32.mrb[0].mxu0
    %v1549 = vadd.f32 %v1421, %v1548
    %v1550 = vpop.f32.mrb[0].mxu0
    %1551 = vmatprep.mubr.f32.mxu0 0.0
    %1552 = vmatmul.mubr.f32.gmra.mrb[0].mxu0 %v1456
    %v1553 = vpop.f32.mrb[0].mxu0
    %v1554 = vadd.f32 %v1426, %v1553
    %v1555 = vpop.f32.mrb[0].mxu0
    %1556 = vmatprep.mubr.f32.mxu0 0.0
    %1557 = vmatmul.mubr.f32.gmra.mrb[0].mxu0 %v1459
    %v1558 = vpop.f32.mrb[0].mxu0
    %v1559 = vadd.f32 %v1431, %v1558
    %v1560 = vpop.f32.mrb[0].mxu0
    %1561 = vmatprep.mubr.f32.mxu0 0.0
    %1562 = vmatmul.mubr.f32.gmra.mrb[0].mxu0 %v1462
    %v1563 = vpop.f32.mrb[0].mxu0
    %v1564 = vadd.f32 %v1436, %v1563
    %v1565 = vpop.f32.mrb[0].mxu0
    %1566 = vmatprep.mubr.f32.mxu0 0.0
    %1567 = vmatmul.mubr.f32.gmra.mrb[0].mxu0 %v1465
    %v1568 = vpop.f32.mrb[0].mxu0
    %v1569 = vadd.f32 %v1441, %v1568
    %v1570 = vpop.f32.mrb[0].mxu0
    %1571 = vdwg.mxu0
    %v1572 = vlaneseq
    %v1573 = vshrl.u32 %v1572, 7
    %v1574 = vsub.s32 6, %v1573
    %v1575 = vrot.slane %v155, %v1574
    %v1576 = vmul.f32 %v1575, %v1534
    %v1577 = vmul.f32 %v1575, %v1539
    %v1578 = vmul.f32 %v1575, %v1544
    %v1579 = vmul.f32 %v1575, %v1549
    %v1580 = vmul.f32 %v1575, %v1554
    %v1581 = vmul.f32 %v1575, %v1559
    %v1582 = vmul.f32 %v1575, %v1564
    %v1583 = vmul.f32 %v1575, %v1569
    %v1584 = vadd.f32 %v1379, %v1576
    %v1585 = vadd.f32 %v1380, %v1577
    %v1586 = vadd.f32 %v1381, %v1578
    %v1587 = vadd.f32 %v1382, %v1579
    %v1588 = vadd.f32 %v1383, %v1580
    %v1589 = vadd.f32 %v1384, %v1581
    %v1590 = vadd.f32 %v1385, %v1582
    %v1591 = vadd.f32 %v1386, %v1583
    %v1592 = vld [vmem:[%s5 + $0x1c0] sm:$0xff]
    %v1593 = vld [vmem:[%s5 + $0x1c8] sm:$0xff]
    %v1594 = vld [vmem:[%s5 + $0x1d0] sm:$0xff]
    %v1595 = vld [vmem:[%s5 + $0x1d8] sm:$0xff]
    %v1596 = vld [vmem:[%s5 + $0x1e0] sm:$0xff]
    %v1597 = vld [vmem:[%s5 + $0x1e8] sm:$0xff]
    %v1598 = vld [vmem:[%s5 + $0x1f0] sm:$0xff]
    %v1599 = vld [vmem:[%s5 + $0x1f8] sm:$0xff]
    %v1600 = vld [vmem:[%s6 + $0x1c0] sm:$0xff]
    %v1601 = vld [vmem:[%s6 + $0x1c8] sm:$0xff]
    %v1602 = vld [vmem:[%s6 + $0x1d0] sm:$0xff]
    %v1603 = vld [vmem:[%s6 + $0x1d8] sm:$0xff]
    %v1604 = vld [vmem:[%s6 + $0x1e0] sm:$0xff]
    %v1605 = vld [vmem:[%s6 + $0x1e8] sm:$0xff]
    %v1606 = vld [vmem:[%s6 + $0x1f0] sm:$0xff]
    %v1607 = vld [vmem:[%s6 + $0x1f8] sm:$0xff]
    %1609 = vset.pattern.permute.xlu0 0
    %1610 = vperm.xlu0 %1609, %v1600
    %v1611 = vpop.permute.xlu0 %1610
    %1614 = vset.pattern.permute.xlu0 0
    %1615 = vperm.xlu0 %1614, %v1601
    %v1616 = vpop.permute.xlu0 %1615
    %1619 = vset.pattern.permute.xlu0 0
    %1620 = vperm.xlu0 %1619, %v1602
    %v1621 = vpop.permute.xlu0 %1620
    %1624 = vset.pattern.permute.xlu0 0
    %1625 = vperm.xlu0 %1624, %v1603
    %v1626 = vpop.permute.xlu0 %1625
    %1629 = vset.pattern.permute.xlu0 0
    %1630 = vperm.xlu0 %1629, %v1604
    %v1631 = vpop.permute.xlu0 %1630
    %1634 = vset.pattern.permute.xlu0 0
    %1635 = vperm.xlu0 %1634, %v1605
    %v1636 = vpop.permute.xlu0 %1635
    %1639 = vset.pattern.permute.xlu0 0
    %1640 = vperm.xlu0 %1639, %v1606
    %v1641 = vpop.permute.xlu0 %1640
    %1644 = vset.pattern.permute.xlu0 0
    %1645 = vperm.xlu0 %1644, %v1607
    %v1646 = vpop.permute.xlu0 %1645
    %v1649 = vsel %vm55, %v1592, 0
    %v1652 = vsel %vm55, %v1593, 0
    %v1655 = vsel %vm55, %v1594, 0
    %v1658 = vsel %vm55, %v1595, 0
    %v1661 = vsel %vm55, %v1596, 0
    %v1664 = vsel %vm55, %v1597, 0
    %v1667 = vsel %vm55, %v1598, 0
    %v1670 = vsel %vm55, %v1599, 0
    %1672 = vmatprep.subr.mxu0 0.0
    %1673 = vmatpush1.msra.mxu0 %v153
    %1674 = vmatprep.subr.mxu0 0.0
    %1675 = vmatpush1.msra.mxu0 %v154
    %1676 = vmatprep.subr.mxu0 0.0
    %1677 = vmatpush1.msra.mxu0 0.0
    %1678 = vmatprep.subr.mxu0 0.0
    %1679 = vmatpush1.msra.mxu0 0.0
    %1680 = vmatprep.subr.mxu0 0.0
    %1681 = vmatpush1.msra.mxu0 0.0
    %1682 = vmatprep.subr.mxu0 0.0
    %1683 = vmatpush1.msra.mxu0 0.0
    %1684 = vmatprep.subr.mxu0 0.0
    %1685 = vmatpush1.msra.mxu0 0.0
    %1686 = vmatprep.subr.mxu0 0.0
    %1687 = vmatpush1.msra.mxu0 0.0
    %1688 = vmatprep.subr.mxu0 0.0
    %1689 = vmatpush1.msra.mxu0 0.0
    %1690 = vmatprep.subr.mxu0 0.0
    %1691 = vmatpush1.msra.mxu0 0.0
    %1692 = vmatprep.subr.mxu0 0.0
    %1693 = vmatpush1.msra.mxu0 0.0
    %1694 = vmatprep.subr.mxu0 0.0
    %1695 = vmatpush1.msra.mxu0 0.0
    %1696 = vmatprep.subr.mxu0 0.0
    %1697 = vmatpush1.msra.mxu0 0.0
    %1698 = vmatprep.subr.mxu0 0.0
    %1699 = vmatpush1.msra.mxu0 0.0
    %1700 = vmatprep.subr.mxu0 0.0
    %1701 = vmatpush1.msra.mxu0 0.0
    %1702 = vmatprep.subr.mxu0 0.0
    %1703 = vmatpush1.msra.mxu0 0.0
    %1704 = vmatprep.subr.mxu0 0.0
    %1705 = vmatpush1.msra.mxu0 0.0
    %1706 = vmatprep.subr.mxu0 0.0
    %1707 = vmatpush1.msra.mxu0 0.0
    %1708 = vmatprep.subr.mxu0 0.0
    %1709 = vmatpush1.msra.mxu0 0.0
    %1710 = vmatprep.subr.mxu0 0.0
    %1711 = vmatpush1.msra.mxu0 0.0
    %1712 = vmatprep.subr.mxu0 0.0
    %1713 = vmatpush1.msra.mxu0 0.0
    %1714 = vmatprep.subr.mxu0 0.0
    %1715 = vmatpush1.msra.mxu0 0.0
    %1716 = vmatprep.subr.mxu0 0.0
    %1717 = vmatpush1.msra.mxu0 0.0
    %1718 = vmatprep.subr.mxu0 0.0
    %1719 = vmatpush1.msra.mxu0 0.0
    %1720 = vmatprep.subr.mxu0 0.0
    %1721 = vmatpush1.msra.mxu0 0.0
    %1722 = vmatprep.subr.mxu0 0.0
    %1723 = vmatpush1.msra.mxu0 0.0
    %1724 = vmatprep.subr.mxu0 0.0
    %1725 = vmatpush1.msra.mxu0 0.0
    %1726 = vmatprep.subr.mxu0 0.0
    %1727 = vmatpush1.msra.mxu0 0.0
    %1728 = vmatprep.subr.mxu0 0.0
    %1729 = vmatpush1.msra.mxu0 0.0
    %1730 = vmatprep.subr.mxu0 0.0
    %1731 = vmatpush1.msra.mxu0 0.0
    %1732 = vmatprep.subr.mxu0 0.0
    %1733 = vmatpush1.msra.mxu0 0.0
    %1734 = vmatprep.subr.mxu0 0.0
    %1735 = vmatpush1.msra.mxu0 0.0
    %1736 = vmatprep.mubr.f32.mxu0 0.0
    %1737 = vmatmul.mubr.f32.gmra.mrb[0].mxu0 %v1649
    %v1738 = vpop.f32.mrb[0].mxu0
    %v1739 = vadd.f32 %v1611, %v1738
    %v1740 = vpop.f32.mrb[0].mxu0
    %1741 = vmatprep.mubr.f32.mxu0 0.0
    %1742 = vmatmul.mubr.f32.gmra.mrb[0].mxu0 %v1652
    %v1743 = vpop.f32.mrb[0].mxu0
    %v1744 = vadd.f32 %v1616, %v1743
    %v1745 = vpop.f32.mrb[0].mxu0
    %1746 = vmatprep.mubr.f32.mxu0 0.0
    %1747 = vmatmul.mubr.f32.gmra.mrb[0].mxu0 %v1655
    %v1748 = vpop.f32.mrb[0].mxu0
    %v1749 = vadd.f32 %v1621, %v1748
    %v1750 = vpop.f32.mrb[0].mxu0
    %1751 = vmatprep.mubr.f32.mxu0 0.0
    %1752 = vmatmul.mubr.f32.gmra.mrb[0].mxu0 %v1658
    %v1753 = vpop.f32.mrb[0].mxu0
    %v1754 = vadd.f32 %v1626, %v1753
    %v1755 = vpop.f32.mrb[0].mxu0
    %1756 = vmatprep.mubr.f32.mxu0 0.0
    %1757 = vmatmul.mubr.f32.gmra.mrb[0].mxu0 %v1661
    %v1758 = vpop.f32.mrb[0].mxu0
    %v1759 = vadd.f32 %v1631, %v1758
    %v1760 = vpop.f32.mrb[0].mxu0
    %1761 = vmatprep.mubr.f32.mxu0 0.0
    %1762 = vmatmul.mubr.f32.gmra.mrb[0].mxu0 %v1664
    %v1763 = vpop.f32.mrb[0].mxu0
    %v1764 = vadd.f32 %v1636, %v1763
    %v1765 = vpop.f32.mrb[0].mxu0
    %1766 = vmatprep.mubr.f32.mxu0 0.0
    %1767 = vmatmul.mubr.f32.gmra.mrb[0].mxu0 %v1667
    %v1768 = vpop.f32.mrb[0].mxu0
    %v1769 = vadd.f32 %v1641, %v1768
    %v1770 = vpop.f32.mrb[0].mxu0
    %1771 = vmatprep.mubr.f32.mxu0 0.0
    %1772 = vmatmul.mubr.f32.gmra.mrb[0].mxu0 %v1670
    %v1773 = vpop.f32.mrb[0].mxu0
    %v1774 = vadd.f32 %v1646, %v1773
    %v1775 = vpop.f32.mrb[0].mxu0
    %1776 = vdwg.mxu0
    %v1777 = vlaneseq
    %v1778 = vshrl.u32 %v1777, 7
    %v1779 = vsub.s32 7, %v1778
    %v1780 = vrot.slane %v155, %v1779
    %v1781 = vmul.f32 %v1780, %v1739
    %v1782 = vmul.f32 %v1780, %v1744
    %v1783 = vmul.f32 %v1780, %v1749
    %v1784 = vmul.f32 %v1780, %v1754
    %v1785 = vmul.f32 %v1780, %v1759
    %v1786 = vmul.f32 %v1780, %v1764
    %v1787 = vmul.f32 %v1780, %v1769
    %v1788 = vmul.f32 %v1780, %v1774
    %v1789 = vadd.f32 %v1584, %v1781
    %v1790 = vadd.f32 %v1585, %v1782
    %v1791 = vadd.f32 %v1586, %v1783
    %v1792 = vadd.f32 %v1587, %v1784
    %v1793 = vadd.f32 %v1588, %v1785
    %v1794 = vadd.f32 %v1589, %v1786
    %v1795 = vadd.f32 %v1590, %v1787
    %v1796 = vadd.f32 %v1591, %v1788
    %v1797 = vlaneseq
    %v1798 = vshrl.u32 %v1797, 7
    %v1799 = vsub.s32 0, %v1798
    %v1800 = vrot.slane %v156, %v1799
    %v1801 = vmul.f32 %v1800, %v1789
    %v1802 = vmul.f32 %v1800, %v1790
    %v1803 = vadd.f32 %v1801, 0.0
    %v1804 = vadd.f32 %v1802, 0.0
    %v1805 = vlaneseq
    %v1806 = vshrl.u32 %v1805, 7
    %v1807 = vsub.s32 1, %v1806
    %v1808 = vrot.slane %v156, %v1807
    %v1809 = vmul.f32 %v1808, %v1791
    %v1810 = vmul.f32 %v1808, %v1792
    %v1811 = vadd.f32 %v1803, %v1809
    %v1812 = vadd.f32 %v1804, %v1810
    %v1813 = vlaneseq
    %v1814 = vshrl.u32 %v1813, 7
    %v1815 = vsub.s32 2, %v1814
    %v1816 = vrot.slane %v156, %v1815
    %v1817 = vmul.f32 %v1816, %v1793
    %v1818 = vmul.f32 %v1816, %v1794
    %v1819 = vadd.f32 %v1811, %v1817
    %v1820 = vadd.f32 %v1812, %v1818
    %v1821 = vlaneseq
    %v1822 = vshrl.u32 %v1821, 7
    %v1823 = vsub.s32 3, %v1822
    %v1824 = vrot.slane %v156, %v1823
    %v1825 = vmul.f32 %v1824, %v1795
    %v1826 = vmul.f32 %v1824, %v1796
    %v1827 = vadd.f32 %v1819, %v1825
    %v1828 = vadd.f32 %v1820, %v1826
    %v1829 = vmul.f32 %v1827, 0.17677669
    %v1830 = vmul.f32 %v1828, 0.17677669
    %s1831 = smul.u32 0, 128
    %v1832 = vlaneseq
    %v1833 = vand.u32 %v1832, 127
    %v1834 = vstv %s1831
    %v1835 = vadd.s32 %v1834, %v1833
    %v1836 = vld [vmem:[%s0] sm:$0xff]
    %v1837 = vld [vmem:[%s0 + $0x8] sm:$0xff]
    %v1838 = vld [vmem:[%s0 + $0x10] sm:$0xff]
    %v1839 = vld [vmem:[%s0 + $0x18] sm:$0xff]
    %v1840 = vld [vmem:[%s0 + $0x20] sm:$0xff]
    %v1841 = vld [vmem:[%s0 + $0x28] sm:$0xff]
    %v1842 = vld [vmem:[%s0 + $0x30] sm:$0xff]
    %v1843 = vld [vmem:[%s0 + $0x38] sm:$0xff]
    %v1844 = vld [vmem:[%s0 + $0x40] sm:$0xff]
    %v1845 = vld [vmem:[%s0 + $0x48] sm:$0xff]
    %v1846 = vld [vmem:[%s0 + $0x50] sm:$0xff]
    %v1847 = vld [vmem:[%s0 + $0x58] sm:$0xff]
    %v1848 = vld [vmem:[%s0 + $0x60] sm:$0xff]
    %v1849 = vld [vmem:[%s0 + $0x68] sm:$0xff]
    %v1850 = vld [vmem:[%s0 + $0x70] sm:$0xff]
    %v1851 = vld [vmem:[%s0 + $0x78] sm:$0xff]
    %1852 = vset.pattern.permute.xlu0 0
    %1853 = vperm.xlu0 %1852, %v1836
    %v1854 = vpop.permute.xlu0 %1853
    %1855 = vset.pattern.permute.xlu0 0
    %1856 = vperm.xlu0 %1855, %v1837
    %v1857 = vpop.permute.xlu0 %1856
    %1858 = vset.pattern.permute.xlu0 0
    %1859 = vperm.xlu0 %1858, %v1838
    %v1860 = vpop.permute.xlu0 %1859
    %1861 = vset.pattern.permute.xlu0 0
    %1862 = vperm.xlu0 %1861, %v1839
    %v1863 = vpop.permute.xlu0 %1862
    %1864 = vset.pattern.permute.xlu0 0
    %1865 = vperm.xlu0 %1864, %v1840
    %v1866 = vpop.permute.xlu0 %1865
    %1867 = vset.pattern.permute.xlu0 0
    %1868 = vperm.xlu0 %1867, %v1841
    %v1869 = vpop.permute.xlu0 %1868
    %1870 = vset.pattern.permute.xlu0 0
    %1871 = vperm.xlu0 %1870, %v1842
    %v1872 = vpop.permute.xlu0 %1871
    %1873 = vset.pattern.permute.xlu0 0
    %1874 = vperm.xlu0 %1873, %v1843
    %v1875 = vpop.permute.xlu0 %1874
    %1876 = vset.pattern.permute.xlu0 0
    %1877 = vperm.xlu0 %1876, %v1844
    %v1878 = vpop.permute.xlu0 %1877
    %1879 = vset.pattern.permute.xlu0 0
    %1880 = vperm.xlu0 %1879, %v1845
    %v1881 = vpop.permute.xlu0 %1880
    %1882 = vset.pattern.permute.xlu0 0
    %1883 = vperm.xlu0 %1882, %v1846
    %v1884 = vpop.permute.xlu0 %1883
    %1885 = vset.pattern.permute.xlu0 0
    %1886 = vperm.xlu0 %1885, %v1847
    %v1887 = vpop.permute.xlu0 %1886
    %1888 = vset.pattern.permute.xlu0 0
    %1889 = vperm.xlu0 %1888, %v1848
    %v1890 = vpop.permute.xlu0 %1889
    %1891 = vset.pattern.permute.xlu0 0
    %1892 = vperm.xlu0 %1891, %v1849
    %v1893 = vpop.permute.xlu0 %1892
    %1894 = vset.pattern.permute.xlu0 0
    %1895 = vperm.xlu0 %1894, %v1850
    %v1896 = vpop.permute.xlu0 %1895
    %1897 = vset.pattern.permute.xlu0 0
    %1898 = vperm.xlu0 %1897, %v1851
    %v1899 = vpop.permute.xlu0 %1898
    %vm1900 = vcmp.eq.s32.totalorder %v1835, %v1854
    %vm1901 = vcmp.eq.s32.totalorder %v1835, %v1857
    %vm1902 = vcmp.eq.s32.totalorder %v1835, %v1860
    %vm1903 = vcmp.eq.s32.totalorder %v1835, %v1863
    %vm1904 = vcmp.eq.s32.totalorder %v1835, %v1866
    %vm1905 = vcmp.eq.s32.totalorder %v1835, %v1869
    %vm1906 = vcmp.eq.s32.totalorder %v1835, %v1872
    %vm1907 = vcmp.eq.s32.totalorder %v1835, %v1875
    %vm1908 = vcmp.eq.s32.totalorder %v1835, %v1878
    %vm1909 = vcmp.eq.s32.totalorder %v1835, %v1881
    %vm1910 = vcmp.eq.s32.totalorder %v1835, %v1884
    %vm1911 = vcmp.eq.s32.totalorder %v1835, %v1887
    %vm1912 = vcmp.eq.s32.totalorder %v1835, %v1890
    %vm1913 = vcmp.eq.s32.totalorder %v1835, %v1893
    %vm1914 = vcmp.eq.s32.totalorder %v1835, %v1896
    %vm1915 = vcmp.eq.s32.totalorder %v1835, %v1899
    %v1916 = vsel %vm1900, 1.0, 0.0
    %v1917 = vsel %vm1901, 1.0, 0.0
    %v1918 = vsel %vm1902, 1.0, 0.0
    %v1919 = vsel %vm1903, 1.0, 0.0
    %v1920 = vsel %vm1904, 1.0, 0.0
    %v1921 = vsel %vm1905, 1.0, 0.0
    %v1922 = vsel %vm1906, 1.0, 0.0
    %v1923 = vsel %vm1907, 1.0, 0.0
    %v1924 = vsel %vm1908, 1.0, 0.0
    %v1925 = vsel %vm1909, 1.0, 0.0
    %v1926 = vsel %vm1910, 1.0, 0.0
    %v1927 = vsel %vm1911, 1.0, 0.0
    %v1928 = vsel %vm1912, 1.0, 0.0
    %v1929 = vsel %vm1913, 1.0, 0.0
    %v1930 = vsel %vm1914, 1.0, 0.0
    %v1931 = vsel %vm1915, 1.0, 0.0
    %v1932 = vld [vmem:[#allocation2] sm:$0xff]
    %v1933 = vld [vmem:[#allocation2 + $0x8] sm:$0xff]
    %1934 = vmatprep.subr.mxu0 0.0
    %1935 = vmatpush1.msra.mxu0 %v1916
    %1936 = vmatprep.subr.mxu0 0.0
    %1937 = vmatpush1.msra.mxu0 %v1917
    %1938 = vmatprep.subr.mxu0 0.0
    %1939 = vmatpush1.msra.mxu0 %v1918
    %1940 = vmatprep.subr.mxu0 0.0
    %1941 = vmatpush1.msra.mxu0 %v1919
    %1942 = vmatprep.subr.mxu0 0.0
    %1943 = vmatpush1.msra.mxu0 %v1920
    %1944 = vmatprep.subr.mxu0 0.0
    %1945 = vmatpush1.msra.mxu0 %v1921
    %1946 = vmatprep.subr.mxu0 0.0
    %1947 = vmatpush1.msra.mxu0 %v1922
    %1948 = vmatprep.subr.mxu0 0.0
    %1949 = vmatpush1.msra.mxu0 %v1923
    %1950 = vmatprep.subr.mxu0 0.0
    %1951 = vmatpush1.msra.mxu0 %v1924
    %1952 = vmatprep.subr.mxu0 0.0
    %1953 = vmatpush1.msra.mxu0 %v1925
    %1954 = vmatprep.subr.mxu0 0.0
    %1955 = vmatpush1.msra.mxu0 %v1926
    %1956 = vmatprep.subr.mxu0 0.0
    %1957 = vmatpush1.msra.mxu0 %v1927
    %1958 = vmatprep.subr.mxu0 0.0
    %1959 = vmatpush1.msra.mxu0 %v1928
    %1960 = vmatprep.subr.mxu0 0.0
    %1961 = vmatpush1.msra.mxu0 %v1929
    %1962 = vmatprep.subr.mxu0 0.0
    %1963 = vmatpush1.msra.mxu0 %v1930
    %1964 = vmatprep.subr.mxu0 0.0
    %1965 = vmatpush1.msra.mxu0 %v1931
    %1966 = vmatprep.subr.mxu0 0.0
    %1967 = vmatpush1.msra.mxu0 0.0
    %1968 = vmatprep.subr.mxu0 0.0
    %1969 = vmatpush1.msra.mxu0 0.0
    %1970 = vmatprep.subr.mxu0 0.0
    %1971 = vmatpush1.msra.mxu0 0.0
    %1972 = vmatprep.subr.mxu0 0.0
    %1973 = vmatpush1.msra.mxu0 0.0
    %1974 = vmatprep.subr.mxu0 0.0
    %1975 = vmatpush1.msra.mxu0 0.0
    %1976 = vmatprep.subr.mxu0 0.0
    %1977 = vmatpush1.msra.mxu0 0.0
    %1978 = vmatprep.subr.mxu0 0.0
    %1979 = vmatpush1.msra.mxu0 0.0
    %1980 = vmatprep.subr.mxu0 0.0
    %1981 = vmatpush1.msra.mxu0 0.0
    %1982 = vmatprep.subr.mxu0 0.0
    %1983 = vmatpush1.msra.mxu0 0.0
    %1984 = vmatprep.subr.mxu0 0.0
    %1985 = vmatpush1.msra.mxu0 0.0
    %1986 = vmatprep.subr.mxu0 0.0
    %1987 = vmatpush1.msra.mxu0 0.0
    %1988 = vmatprep.subr.mxu0 0.0
    %1989 = vmatpush1.msra.mxu0 0.0
    %1990 = vmatprep.subr.mxu0 0.0
    %1991 = vmatpush1.msra.mxu0 0.0
    %1992 = vmatprep.subr.mxu0 0.0
    %1993 = vmatpush1.msra.mxu0 0.0
    %1994 = vmatprep.subr.mxu0 0.0
    %1995 = vmatpush1.msra.mxu0 0.0
    %1996 = vmatprep.subr.mxu0 0.0
    %1997 = vmatpush1.msra.mxu0 0.0
    %1998 = vmatprep.mubr.f32.mxu0 0.0
    %1999 = vmatmul.mubr.f32.gmra.mrb[0].mxu0 %v1829
    %v2000 = vpop.f32.mrb[0].mxu0
    %v2001 = vadd.f32 0.0, %v2000
    %v2002 = vpop.f32.mrb[0].mxu0
    %2003 = vmatprep.mubr.f32.mxu0 0.0
    %2004 = vmatmul.mubr.f32.gmra.mrb[0].mxu0 %v1830
    %v2005 = vpop.f32.mrb[0].mxu0
    %v2006 = vadd.f32 0.0, %v2005
    %v2007 = vpop.f32.mrb[0].mxu0
    %2008 = vdwg.mxu0
    %v2009 = vadd.f32 %v1932, %v2001
    %v2010 = vadd.f32 %v1933, %v2006
    %2011 = vst [vmem:[#allocation2] sm:$0xff] %v2009
    %2012 = vst [vmem:[#allocation2 + $0x8] sm:$0xff] %v2010
    // Predicated region
    $region42: #{tpu_custom_call.1} parent=1 // pred_check
      %p2013 = pneg %p33
    $region43: #{tpu_custom_call.1} parent=1 // pred_check_branch
      %2015 = sbr.rel (%p2013) target = $region45
    $region44: #{tpu_custom_call.1} parent=1 // pred_region
      %v2016 = vld [vmem:[#allocation2] sm:$0xff]
      %v2017 = vld [vmem:[#allocation2 + $0x8] sm:$0xff]
      %v2018 = vld [vmem:[%s7] sm:$0x1]
      %v2020 = vlaneseq
      %v2021 = vshrl.u32 %v2020, 7
      %v2022 = vsub.s32 0, %v2021
      %v2023 = vrot.slane %v2018, %v2022
      %v2025 = vmul.f32 %v2016, %v2023
      %v2026 = vmul.f32 %v2017, %v2023
      %v2027 = vld [vmem:[%s8] sm:$0xff]
      %v2028 = vld [vmem:[%s8 + $0x8] sm:$0xff]
      %v2029 = vadd.f32 %v2025, %v2027
      %v2030 = vadd.f32 %v2026, %v2028
      %2031 = vst [vmem:[#allocation2] sm:$0xff] %v2029
      %2032 = vst [vmem:[#allocation2 + $0x8] sm:$0xff] %v2030
    $region45: #{tpu_custom_call.1} parent=1 // pred_fallthru
      _
    // Predicated region
    $region46: #{tpu_custom_call.1} parent=1 // pred_check
      _
    $region47: #{tpu_custom_call.1} parent=1 // pred_check_branch
      %2034 = sbr.rel (0) target = $region49
    $region48: #{tpu_custom_call.1} parent=1 // pred_region
      %s2036 = ssub.s32 256, 256
      %2037 = vsyncadd [#allocation3], %s2036
      %s2038 = sshll.u32 [#allocation2], 4
      %s2039 = int_to_ptr.vmem [resolvable:$true] %s2038
      %2044 = dma.vmem_to_hbm [thread:$0]  %s2039, 256, %s9, [#allocation3], 128, 128, 8
    $region49: #{tpu_custom_call.1} parent=1 // pred_fallthru
      _
    // Predicated region
    $region50: #{tpu_custom_call.1} parent=1 // pred_check
      _
    $region51: #{tpu_custom_call.1} parent=1 // pred_check_branch
      %2046 = sbr.rel (0) target = $region53
    $region52: #{tpu_custom_call.1} parent=1 // pred_region
      %2047 = dma.done [#allocation3], 256
    $region53: #{tpu_custom_call.1} parent=1 // pred_fallthru
      _
    %2048 = vsyncpa [#allocation3], 1

</llo_original>
